<compile_context>
chip_gen: v7x
topology: tpu7x:2x2x1
jax: 0.10.0
libtpu: 0.0.40
codegen_flags: <defaults>
</compile_context>

<pallas_src>
import functools

import jax
import jax.numpy as jnp
from jax.experimental import pallas as pl
from jax.experimental.pallas import tpu as pltpu


LANE = 128  # pad all hidden channel widths (and the feature dim) to this


def _round_up(n, m):
    return ((n + m - 1) // m) * m


def _pad_to(a, shape):
    return jnp.pad(a, [(0, s - d) for d, s in zip(a.shape, shape)])


# ----------------------------------------------------------------------------
# Single fused kernel: early-fusion MLP + full TCN stack, batch stacked in rows
# ----------------------------------------------------------------------------
def _fused_head_kernel(x_ref, ef_w_ref, ef_b_ref, *rest,
                       has_down, dilations, BT, T, Cp):
    o_ref = rest[-1]
    wrefs = rest[:-1]

    # time index of each stacked row: row r -> (batch r // T, time r % T)
    t_idx = jax.lax.broadcasted_iota(jnp.int32, (BT, Cp), 0) % T

    def bf16(a):
        return a.astype(jnp.bfloat16)

    def causal_shift(y, d):
        # y[t] -> y[t-d]; zero where t < d (also kills any cross-batch wrap).
        rolled = pltpu.roll(y, shift=d, axis=0)
        return jnp.where(t_idx >= d, rolled, 0.0)

    # ---- early fusion MLP: ReLU(x @ W + b) -------------------------------
    h = jnp.dot(bf16(x_ref[...]), ef_w_ref[...],
                preferred_element_type=jnp.float32)
    h = jnp.maximum(h + ef_b_ref[...].astype(jnp.float32), 0.0)   # (BT, Cp) f32

    # ---- TCN levels (static unroll; everything stays on-chip) -----------
    p = 0
    for lvl, d in enumerate(dilations):
        w1, b1, w2, b2 = wrefs[p], wrefs[p + 1], wrefs[p + 2], wrefs[p + 3]
        p += 4
        if has_down[lvl]:
            wd, bd = wrefs[p], wrefs[p + 1]
            p += 2

        # conv1 (dilated causal, K=2) + ReLU:
        #   out[t] = W0 @ h[t-d] + W1 @ h[t] + b   (shift applied post-matmul)
        hb = bf16(h)
        y0 = jnp.dot(hb, w1[0], preferred_element_type=jnp.float32)
        y1 = jnp.dot(hb, w1[1], preferred_element_type=jnp.float32)
        h1 = jnp.maximum(causal_shift(y0, d) + y1
                         + b1[...].astype(jnp.float32), 0.0)

        # residual path (1x1 downsample only when channel count changes)
        if has_down[lvl]:
            res = jnp.dot(hb, wd[...], preferred_element_type=jnp.float32)
            res = res + bd[...].astype(jnp.float32)
        else:
            res = h

        # conv2 + ReLU, then ReLU(out + res)
        h1b = bf16(h1)
        z0 = jnp.dot(h1b, w2[0], preferred_element_type=jnp.float32)
        z1 = jnp.dot(h1b, w2[1], preferred_element_type=jnp.float32)
        h2 = jnp.maximum(causal_shift(z0, d) + z1
                         + b2[...].astype(jnp.float32), 0.0)

        h = jnp.maximum(h2 + res, 0.0)

    o_ref[...] = h.astype(o_ref.dtype)                            # lane-dense


# ----------------------------------------------------------------------------
# Module forward
# ----------------------------------------------------------------------------
def head_fusion_forward(inputs, params, num_chd):
    if len(inputs) != num_chd:
        raise ValueError("input dimension not fits")

    # cat(unsqueeze(-1)) -> (B, T, in_ch, num_chd), flatten last two for MLP_1D
    combined = jnp.concatenate([x[..., None] for x in inputs], axis=-1)
    B, T, C, N = combined.shape
    F = C * N
    Cp, Fp = params["Cp"], params["Fp"]

    # stack batch into the matmul M dim and pad the feature dim lane-dense
    x = combined.reshape(B * T, F)
    x = jnp.pad(x, ((0, 0), (0, Fp - F)))

    levels = params["levels"]
    has_down = tuple(l["wd"] is not None for l in levels)
    dilations = tuple(2 ** i for i in range(len(levels)))

    args = [x, params["ef_w"], params["ef_b"]]
    for lvl in levels:
        args += [lvl["w1"], lvl["b1"], lvl["w2"], lvl["b2"]]
        if lvl["wd"] is not None:
            args += [lvl["wd"], lvl["bd"]]

    kern = functools.partial(_fused_head_kernel, has_down=has_down,
                             dilations=dilations, BT=B * T, T=T, Cp=Cp)

    # Grid-less single invocation: whole problem (<1 MiB) lives in VMEM, one
    # launch, weights DMA'd exactly once (no per-core duplication on v7x).
    out = pl.pallas_call(
        kern,
        out_shape=jax.ShapeDtypeStruct((B * T, Cp), jnp.float32),
    )(*args)

    # (B*T, Cp) -> (B, T, hid_ch[-1]): trim the channel padding once at the end
    return out.reshape(B, T, Cp)[..., :params["c_out"]]


# ----------------------------------------------------------------------------
# Deterministic synthetic parameters (pre-padded, stored in bfloat16)
# ----------------------------------------------------------------------------
def init_params(key, in_ch, hid_ch, num_chd, kernel_size=2):
    Cp = _round_up(max(hid_ch), LANE)
    F = in_ch * num_chd
    Fp = _round_up(F, LANE)

    def nrm(k, shape, scale=0.1):
        return scale * jax.random.normal(k, shape, jnp.float32)

    keys = iter(jax.random.split(key, 2 + 6 * len(hid_ch)))

    params = {
        "ef_w": _pad_to(nrm(next(keys), (F, hid_ch[0])),
                        (Fp, Cp)).astype(jnp.bfloat16),
        "ef_b": _pad_to(nrm(next(keys), (1, hid_ch[0])),
                        (1, Cp)).astype(jnp.bfloat16),
        "levels": [],
        "Cp": Cp,
        "Fp": Fp,
        "c_out": hid_ch[-1],
    }

    def pack_conv(k, cin, cout):
        # (K, cin, cout) -> (K, Cp, Cp): tap 0 multiplies x[t-d], tap 1 x[t]
        # (matches padded + chomped causal Conv1d tap ordering).
        w = nrm(k, (kernel_size, cin, cout))
        return _pad_to(w, (kernel_size, Cp, Cp)).astype(jnp.bfloat16)

    for i, cout in enumerate(hid_ch):
        cin = hid_ch[0] if i == 0 else hid_ch[i - 1]
        lvl = {
            "w1": pack_conv(next(keys), cin, cout),
            "b1": _pad_to(nrm(next(keys), (1, cout)), (1, Cp)).astype(jnp.bfloat16),
            "w2": pack_conv(next(keys), cout, cout),
            "b2": _pad_to(nrm(next(keys), (1, cout)), (1, Cp)).astype(jnp.bfloat16),
            "wd": (_pad_to(nrm(next(keys), (cin, cout)),
                           (Cp, Cp)).astype(jnp.bfloat16)
                   if cin != cout else None),
            "bd": (_pad_to(nrm(next(keys), (1, cout)),
                           (1, Cp)).astype(jnp.bfloat16)
                   if cin != cout else None),
        }
        params["levels"].append(lvl)
    return params


if __name__ == "__main__":
    B, T = 2, 8
    in_ch, num_chd = 4, 3
    hid_ch = [16, 32]

    key = jax.random.PRNGKey(0)
    k_in, k_p = jax.random.split(key)
    inputs = [
        jax.random.normal(jax.random.fold_in(k_in, i), (B, T, in_ch), jnp.float32)
        for i in range(num_chd)
    ]
    params = init_params(k_p, in_ch, hid_ch, num_chd)

    out = head_fusion_forward(inputs, params, num_chd)
    out = jax.block_until_ready(out)
    assert out.shape == (B, T, hid_ch[-1]), out.shape
    assert bool(jnp.all(jnp.isfinite(out)))
    print("KERNEL_OK")
</pallas_src>

<mosaic_0001>
module attributes {stable_mosaic.version = 11 : i64} {
  func.func @_fused_head_kernel(%arg0: memref<16x128xf32, #tpu.memory_space<vmem>>, %arg1: memref<128x128xbf16, #tpu.memory_space<vmem>>, %arg2: memref<1x128xbf16, #tpu.memory_space<vmem>>, %arg3: memref<2x128x128xbf16, #tpu.memory_space<vmem>>, %arg4: memref<1x128xbf16, #tpu.memory_space<vmem>>, %arg5: memref<2x128x128xbf16, #tpu.memory_space<vmem>>, %arg6: memref<1x128xbf16, #tpu.memory_space<vmem>>, %arg7: memref<2x128x128xbf16, #tpu.memory_space<vmem>>, %arg8: memref<1x128xbf16, #tpu.memory_space<vmem>>, %arg9: memref<2x128x128xbf16, #tpu.memory_space<vmem>>, %arg10: memref<1x128xbf16, #tpu.memory_space<vmem>>, %arg11: memref<128x128xbf16, #tpu.memory_space<vmem>>, %arg12: memref<1x128xbf16, #tpu.memory_space<vmem>>, %arg13: memref<16x128xf32, #tpu.memory_space<vmem>>) attributes {dimension_semantics = [], scalar_prefetch = 0 : i64, scratch_operands = 0 : i64, tpu.core_type = #tpu.core_type<tc>} {
    %0 = tpu.iota {dimensions = array<i32: 0>} : vector<16x128xi32>
    %c8_i32 = arith.constant 8 : i32
    %c0_i32 = arith.constant 0 : i32
    %1 = arith.cmpi eq, %c8_i32, %c0_i32 : i32
    %c1_i32 = arith.constant 1 : i32
    %2 = arith.select %1, %c1_i32, %c8_i32 : i32
    %3 = vector.broadcast %2 : i32 to vector<16x128xi32>
    %4 = arith.remsi %0, %3 : vector<16x128xi32>
    %c0_i32_0 = arith.constant 0 : i32
    %5 = vector.broadcast %c0_i32_0 : i32 to vector<16x128xi32>
    %6 = arith.cmpi ne, %4, %5 : vector<16x128xi32>
    %c0_i32_1 = arith.constant 0 : i32
    %7 = vector.broadcast %c0_i32_1 : i32 to vector<16x128xi32>
    %8 = arith.cmpi slt, %4, %7 : vector<16x128xi32>
    %c0_i32_2 = arith.constant 0 : i32
    %9 = arith.cmpi slt, %2, %c0_i32_2 : i32
    %10 = vector.broadcast %9 : i1 to vector<16x128xi1>
    %11 = vector.broadcast %10 : vector<16x128xi1> to vector<16x128xi1>
    %12 = arith.xori %8, %11 : vector<16x128xi1>
    %13 = arith.andi %12, %6 : vector<16x128xi1>
    %14 = vector.broadcast %2 : i32 to vector<16x128xi32>
    %15 = arith.addi %4, %14 : vector<16x128xi32>
    %16 = arith.select %13, %15, %4 : vector<16x128xi1>, vector<16x128xi32>
    %c0 = arith.constant 0 : index
    %c0_3 = arith.constant 0 : index
    %17 = vector.load %arg0[%c0, %c0_3] : memref<16x128xf32, #tpu.memory_space<vmem>>, vector<16x128xf32>
    %18 = arith.truncf %17 : vector<16x128xf32> to vector<16x128xbf16>
    %c0_4 = arith.constant 0 : index
    %c0_5 = arith.constant 0 : index
    %19 = vector.load %arg1[%c0_4, %c0_5] : memref<128x128xbf16, #tpu.memory_space<vmem>>, vector<128x128xbf16>
    %cst = arith.constant dense<0.000000e+00> : vector<16x128xf32>
    %20 = tpu.matmul %18, %19, %cst {dimension_numbers = #tpu.dot_dimension_numbers<[1], [0], [0], [1], [0, 0, 1, 1], [], []>} : vector<16x128xbf16>, vector<128x128xbf16>, vector<16x128xf32> -> vector<16x128xf32>
    %c0_6 = arith.constant 0 : index
    %c0_7 = arith.constant 0 : index
    %21 = vector.load %arg2[%c0_6, %c0_7] : memref<1x128xbf16, #tpu.memory_space<vmem>>, vector<1x128xbf16>
    %22 = arith.extf %21 : vector<1x128xbf16> to vector<1x128xf32>
    %23 = vector.broadcast %22 : vector<1x128xf32> to vector<16x128xf32>
    %24 = arith.addf %20, %23 : vector<16x128xf32>
    %cst_8 = arith.constant 0.000000e+00 : f32
    %25 = vector.broadcast %cst_8 : f32 to vector<16x128xf32>
    %26 = arith.maximumf %24, %25 : vector<16x128xf32>
    %27 = arith.truncf %26 : vector<16x128xf32> to vector<16x128xbf16>
    %c0_9 = arith.constant 0 : index
    %c0_10 = arith.constant 0 : index
    %c0_11 = arith.constant 0 : index
    %28 = vector.load %arg3[%c0_9, %c0_10, %c0_11] : memref<2x128x128xbf16, #tpu.memory_space<vmem>>, vector<1x128x128xbf16>
    %29 = vector.shape_cast %28 : vector<1x128x128xbf16> to vector<128x128xbf16>
    %cst_12 = arith.constant dense<0.000000e+00> : vector<16x128xf32>
    %30 = tpu.matmul %27, %29, %cst_12 {dimension_numbers = #tpu.dot_dimension_numbers<[1], [0], [0], [1], [0, 0, 1, 1], [], []>} : vector<16x128xbf16>, vector<128x128xbf16>, vector<16x128xf32> -> vector<16x128xf32>
    %c1 = arith.constant 1 : index
    %c0_13 = arith.constant 0 : index
    %c0_14 = arith.constant 0 : index
    %31 = vector.load %arg3[%c1, %c0_13, %c0_14] : memref<2x128x128xbf16, #tpu.memory_space<vmem>>, vector<1x128x128xbf16>
    %32 = vector.shape_cast %31 : vector<1x128x128xbf16> to vector<128x128xbf16>
    %cst_15 = arith.constant dense<0.000000e+00> : vector<16x128xf32>
    %33 = tpu.matmul %27, %32, %cst_15 {dimension_numbers = #tpu.dot_dimension_numbers<[1], [0], [0], [1], [0, 0, 1, 1], [], []>} : vector<16x128xbf16>, vector<128x128xbf16>, vector<16x128xf32> -> vector<16x128xf32>
    %c1_i32_16 = arith.constant 1 : i32
    %34 = tpu.dynamic_rotate %30 by %c1_i32_16 dim 0 : vector<16x128xf32>, i32 -> vector<16x128xf32>
    %c1_i32_17 = arith.constant 1 : i32
    %35 = vector.broadcast %c1_i32_17 : i32 to vector<16x128xi32>
    %36 = arith.cmpi sge, %16, %35 : vector<16x128xi32>
    %cst_18 = arith.constant 0.000000e+00 : f32
    %37 = vector.broadcast %cst_18 : f32 to vector<16x128xf32>
    %38 = arith.select %36, %34, %37 : vector<16x128xi1>, vector<16x128xf32>
    %39 = arith.addf %38, %33 : vector<16x128xf32>
    %c0_19 = arith.constant 0 : index
    %c0_20 = arith.constant 0 : index
    %40 = vector.load %arg4[%c0_19, %c0_20] : memref<1x128xbf16, #tpu.memory_space<vmem>>, vector<1x128xbf16>
    %41 = arith.extf %40 : vector<1x128xbf16> to vector<1x128xf32>
    %42 = vector.broadcast %41 : vector<1x128xf32> to vector<16x128xf32>
    %43 = arith.addf %39, %42 : vector<16x128xf32>
    %cst_21 = arith.constant 0.000000e+00 : f32
    %44 = vector.broadcast %cst_21 : f32 to vector<16x128xf32>
    %45 = arith.maximumf %43, %44 : vector<16x128xf32>
    %46 = arith.truncf %45 : vector<16x128xf32> to vector<16x128xbf16>
    %c0_22 = arith.constant 0 : index
    %c0_23 = arith.constant 0 : index
    %c0_24 = arith.constant 0 : index
    %47 = vector.load %arg5[%c0_22, %c0_23, %c0_24] : memref<2x128x128xbf16, #tpu.memory_space<vmem>>, vector<1x128x128xbf16>
    %48 = vector.shape_cast %47 : vector<1x128x128xbf16> to vector<128x128xbf16>
    %cst_25 = arith.constant dense<0.000000e+00> : vector<16x128xf32>
    %49 = tpu.matmul %46, %48, %cst_25 {dimension_numbers = #tpu.dot_dimension_numbers<[1], [0], [0], [1], [0, 0, 1, 1], [], []>} : vector<16x128xbf16>, vector<128x128xbf16>, vector<16x128xf32> -> vector<16x128xf32>
    %c1_26 = arith.constant 1 : index
    %c0_27 = arith.constant 0 : index
    %c0_28 = arith.constant 0 : index
    %50 = vector.load %arg5[%c1_26, %c0_27, %c0_28] : memref<2x128x128xbf16, #tpu.memory_space<vmem>>, vector<1x128x128xbf16>
    %51 = vector.shape_cast %50 : vector<1x128x128xbf16> to vector<128x128xbf16>
    %cst_29 = arith.constant dense<0.000000e+00> : vector<16x128xf32>
    %52 = tpu.matmul %46, %51, %cst_29 {dimension_numbers = #tpu.dot_dimension_numbers<[1], [0], [0], [1], [0, 0, 1, 1], [], []>} : vector<16x128xbf16>, vector<128x128xbf16>, vector<16x128xf32> -> vector<16x128xf32>
    %c1_i32_30 = arith.constant 1 : i32
    %53 = tpu.dynamic_rotate %49 by %c1_i32_30 dim 0 : vector<16x128xf32>, i32 -> vector<16x128xf32>
    %c1_i32_31 = arith.constant 1 : i32
    %54 = vector.broadcast %c1_i32_31 : i32 to vector<16x128xi32>
    %55 = arith.cmpi sge, %16, %54 : vector<16x128xi32>
    %cst_32 = arith.constant 0.000000e+00 : f32
    %56 = vector.broadcast %cst_32 : f32 to vector<16x128xf32>
    %57 = arith.select %55, %53, %56 : vector<16x128xi1>, vector<16x128xf32>
    %58 = arith.addf %57, %52 : vector<16x128xf32>
    %c0_33 = arith.constant 0 : index
    %c0_34 = arith.constant 0 : index
    %59 = vector.load %arg6[%c0_33, %c0_34] : memref<1x128xbf16, #tpu.memory_space<vmem>>, vector<1x128xbf16>
    %60 = arith.extf %59 : vector<1x128xbf16> to vector<1x128xf32>
    %61 = vector.broadcast %60 : vector<1x128xf32> to vector<16x128xf32>
    %62 = arith.addf %58, %61 : vector<16x128xf32>
    %cst_35 = arith.constant 0.000000e+00 : f32
    %63 = vector.broadcast %cst_35 : f32 to vector<16x128xf32>
    %64 = arith.maximumf %62, %63 : vector<16x128xf32>
    %65 = arith.addf %64, %26 : vector<16x128xf32>
    %cst_36 = arith.constant 0.000000e+00 : f32
    %66 = vector.broadcast %cst_36 : f32 to vector<16x128xf32>
    %67 = arith.maximumf %65, %66 : vector<16x128xf32>
    %68 = arith.truncf %67 : vector<16x128xf32> to vector<16x128xbf16>
    %c0_37 = arith.constant 0 : index
    %c0_38 = arith.constant 0 : index
    %c0_39 = arith.constant 0 : index
    %69 = vector.load %arg7[%c0_37, %c0_38, %c0_39] : memref<2x128x128xbf16, #tpu.memory_space<vmem>>, vector<1x128x128xbf16>
    %70 = vector.shape_cast %69 : vector<1x128x128xbf16> to vector<128x128xbf16>
    %cst_40 = arith.constant dense<0.000000e+00> : vector<16x128xf32>
    %71 = tpu.matmul %68, %70, %cst_40 {dimension_numbers = #tpu.dot_dimension_numbers<[1], [0], [0], [1], [0, 0, 1, 1], [], []>} : vector<16x128xbf16>, vector<128x128xbf16>, vector<16x128xf32> -> vector<16x128xf32>
    %c1_41 = arith.constant 1 : index
    %c0_42 = arith.constant 0 : index
    %c0_43 = arith.constant 0 : index
    %72 = vector.load %arg7[%c1_41, %c0_42, %c0_43] : memref<2x128x128xbf16, #tpu.memory_space<vmem>>, vector<1x128x128xbf16>
    %73 = vector.shape_cast %72 : vector<1x128x128xbf16> to vector<128x128xbf16>
    %cst_44 = arith.constant dense<0.000000e+00> : vector<16x128xf32>
    %74 = tpu.matmul %68, %73, %cst_44 {dimension_numbers = #tpu.dot_dimension_numbers<[1], [0], [0], [1], [0, 0, 1, 1], [], []>} : vector<16x128xbf16>, vector<128x128xbf16>, vector<16x128xf32> -> vector<16x128xf32>
    %c2_i32 = arith.constant 2 : i32
    %75 = tpu.dynamic_rotate %71 by %c2_i32 dim 0 : vector<16x128xf32>, i32 -> vector<16x128xf32>
    %c2_i32_45 = arith.constant 2 : i32
    %76 = vector.broadcast %c2_i32_45 : i32 to vector<16x128xi32>
    %77 = arith.cmpi sge, %16, %76 : vector<16x128xi32>
    %cst_46 = arith.constant 0.000000e+00 : f32
    %78 = vector.broadcast %cst_46 : f32 to vector<16x128xf32>
    %79 = arith.select %77, %75, %78 : vector<16x128xi1>, vector<16x128xf32>
    %80 = arith.addf %79, %74 : vector<16x128xf32>
    %c0_47 = arith.constant 0 : index
    %c0_48 = arith.constant 0 : index
    %81 = vector.load %arg8[%c0_47, %c0_48] : memref<1x128xbf16, #tpu.memory_space<vmem>>, vector<1x128xbf16>
    %82 = arith.extf %81 : vector<1x128xbf16> to vector<1x128xf32>
    %83 = vector.broadcast %82 : vector<1x128xf32> to vector<16x128xf32>
    %84 = arith.addf %80, %83 : vector<16x128xf32>
    %cst_49 = arith.constant 0.000000e+00 : f32
    %85 = vector.broadcast %cst_49 : f32 to vector<16x128xf32>
    %86 = arith.maximumf %84, %85 : vector<16x128xf32>
    %c0_50 = arith.constant 0 : index
    %c0_51 = arith.constant 0 : index
    %87 = vector.load %arg11[%c0_50, %c0_51] : memref<128x128xbf16, #tpu.memory_space<vmem>>, vector<128x128xbf16>
    %cst_52 = arith.constant dense<0.000000e+00> : vector<16x128xf32>
    %88 = tpu.matmul %68, %87, %cst_52 {dimension_numbers = #tpu.dot_dimension_numbers<[1], [0], [0], [1], [0, 0, 1, 1], [], []>} : vector<16x128xbf16>, vector<128x128xbf16>, vector<16x128xf32> -> vector<16x128xf32>
    %c0_53 = arith.constant 0 : index
    %c0_54 = arith.constant 0 : index
    %89 = vector.load %arg12[%c0_53, %c0_54] : memref<1x128xbf16, #tpu.memory_space<vmem>>, vector<1x128xbf16>
    %90 = arith.extf %89 : vector<1x128xbf16> to vector<1x128xf32>
    %91 = vector.broadcast %90 : vector<1x128xf32> to vector<16x128xf32>
    %92 = arith.addf %88, %91 : vector<16x128xf32>
    %93 = arith.truncf %86 : vector<16x128xf32> to vector<16x128xbf16>
    %c0_55 = arith.constant 0 : index
    %c0_56 = arith.constant 0 : index
    %c0_57 = arith.constant 0 : index
    %94 = vector.load %arg9[%c0_55, %c0_56, %c0_57] : memref<2x128x128xbf16, #tpu.memory_space<vmem>>, vector<1x128x128xbf16>
    %95 = vector.shape_cast %94 : vector<1x128x128xbf16> to vector<128x128xbf16>
    %cst_58 = arith.constant dense<0.000000e+00> : vector<16x128xf32>
    %96 = tpu.matmul %93, %95, %cst_58 {dimension_numbers = #tpu.dot_dimension_numbers<[1], [0], [0], [1], [0, 0, 1, 1], [], []>} : vector<16x128xbf16>, vector<128x128xbf16>, vector<16x128xf32> -> vector<16x128xf32>
    %c1_59 = arith.constant 1 : index
    %c0_60 = arith.constant 0 : index
    %c0_61 = arith.constant 0 : index
    %97 = vector.load %arg9[%c1_59, %c0_60, %c0_61] : memref<2x128x128xbf16, #tpu.memory_space<vmem>>, vector<1x128x128xbf16>
    %98 = vector.shape_cast %97 : vector<1x128x128xbf16> to vector<128x128xbf16>
    %cst_62 = arith.constant dense<0.000000e+00> : vector<16x128xf32>
    %99 = tpu.matmul %93, %98, %cst_62 {dimension_numbers = #tpu.dot_dimension_numbers<[1], [0], [0], [1], [0, 0, 1, 1], [], []>} : vector<16x128xbf16>, vector<128x128xbf16>, vector<16x128xf32> -> vector<16x128xf32>
    %c2_i32_63 = arith.constant 2 : i32
    %100 = tpu.dynamic_rotate %96 by %c2_i32_63 dim 0 : vector<16x128xf32>, i32 -> vector<16x128xf32>
    %c2_i32_64 = arith.constant 2 : i32
    %101 = vector.broadcast %c2_i32_64 : i32 to vector<16x128xi32>
    %102 = arith.cmpi sge, %16, %101 : vector<16x128xi32>
    %cst_65 = arith.constant 0.000000e+00 : f32
    %103 = vector.broadcast %cst_65 : f32 to vector<16x128xf32>
    %104 = arith.select %102, %100, %103 : vector<16x128xi1>, vector<16x128xf32>
    %105 = arith.addf %104, %99 : vector<16x128xf32>
    %c0_66 = arith.constant 0 : index
    %c0_67 = arith.constant 0 : index
    %106 = vector.load %arg10[%c0_66, %c0_67] : memref<1x128xbf16, #tpu.memory_space<vmem>>, vector<1x128xbf16>
    %107 = arith.extf %106 : vector<1x128xbf16> to vector<1x128xf32>
    %108 = vector.broadcast %107 : vector<1x128xf32> to vector<16x128xf32>
    %109 = arith.addf %105, %108 : vector<16x128xf32>
    %cst_68 = arith.constant 0.000000e+00 : f32
    %110 = vector.broadcast %cst_68 : f32 to vector<16x128xf32>
    %111 = arith.maximumf %109, %110 : vector<16x128xf32>
    %112 = arith.addf %111, %92 : vector<16x128xf32>
    %cst_69 = arith.constant 0.000000e+00 : f32
    %113 = vector.broadcast %cst_69 : f32 to vector<16x128xf32>
    %114 = arith.maximumf %112, %113 : vector<16x128xf32>
    %c0_70 = arith.constant 0 : index
    %c0_71 = arith.constant 0 : index
    %115 = vector.load %arg13[%c0_70, %c0_71] : memref<16x128xf32, #tpu.memory_space<vmem>>, vector<16x128xf32>
    tpu.vector_store %arg13[%c0_70, %c0_71], %114 {strides = array<i32>} : memref<16x128xf32, #tpu.memory_space<vmem>>, vector<16x128xf32>,
    return
  }
}

</mosaic_0001>

<llo_original>
// kernel: tpu_custom_call.1
$region0: #{tpu_custom_call.1}
  #allocation0 [shape = 'u32[]', space=smem, size = 0x4, offset = 0x4, fixed_abs, tag = 'smem constant byte address 0x4 - core index']
  #allocation1 [shape = 'u32[144,128]{1,0:T(1,128)}', space=vmem, size = 0x12000, scoped, tag = 'internal scratch']
  %s0 = inlined_call_operand.hbm [shape: f32[16,128], index: 0, kind: input, shape index: {}]
  %s1 = inlined_call_operand.hbm [shape: bf16[128,128], index: 1, kind: input, shape index: {}]
  %s2 = inlined_call_operand.vmem [shape: bf16[1,128], index: 2, kind: input, shape index: {}]
  %s3 = inlined_call_operand.hbm [shape: bf16[2,128,128], index: 3, kind: input, shape index: {}]
  %s4 = inlined_call_operand.vmem [shape: bf16[1,128], index: 4, kind: input, shape index: {}]
  %s5 = inlined_call_operand.hbm [shape: bf16[2,128,128], index: 5, kind: input, shape index: {}]
  %s6 = inlined_call_operand.vmem [shape: bf16[1,128], index: 6, kind: input, shape index: {}]
  %s7 = inlined_call_operand.hbm [shape: bf16[2,128,128], index: 7, kind: input, shape index: {}]
  %s8 = inlined_call_operand.vmem [shape: bf16[1,128], index: 8, kind: input, shape index: {}]
  %s9 = inlined_call_operand.hbm [shape: bf16[2,128,128], index: 9, kind: input, shape index: {}]
  %s10 = inlined_call_operand.vmem [shape: bf16[1,128], index: 10, kind: input, shape index: {}]
  %s11 = inlined_call_operand.hbm [shape: bf16[128,128], index: 11, kind: input, shape index: {}]
  %s12 = inlined_call_operand.vmem [shape: bf16[1,128], index: 12, kind: input, shape index: {}]
  %s13 = inlined_call_operand.hbm [shape: f32[16,128], index: 13, kind: output, shape index: {}]
  %s14 = sld [smem:[#allocation0]]
  $region90: #{tpu_custom_call.1} parent=0
    _
  %s16 = ssub.s32 1, %s14
  %s17 = scalar_select 0, %s16, %s14
  $region1: #{tpu_custom_call.1} parent=0
    #allocation2 [shape = 'u8[8192]{0}', space=vmem, size = 0x2000, scoped, tag = 'input window, operand 0, single buffered']
    #allocation3 [shape = 's32[1]{0}', space=sflag, size = 0x4, scoped, tag = 'scoped memory for tpu_custom_call.1']
    #allocation4 [shape = 's32[1]{0}', space=sflag, size = 0x4, scoped, tag = 'scoped memory for tpu_custom_call.1']
    #allocation5 [shape = 'u8[32768]{0}', space=vmem, size = 0x8000, scoped, tag = 'input window, operand 1, single buffered']
    #allocation6 [shape = 's32[1]{0}', space=sflag, size = 0x4, scoped, tag = 'scoped memory for tpu_custom_call.1']
    #allocation7 [shape = 'u8[65536]{0}', space=vmem, size = 0x10000, scoped, tag = 'input window, operand 3, single buffered']
    #allocation8 [shape = 'u8[65536]{0}', space=vmem, size = 0x10000, scoped, tag = 'input window, operand 5, single buffered']
    #allocation9 [shape = 's32[1]{0}', space=sflag, size = 0x4, scoped, tag = 'scoped memory for tpu_custom_call.1']
    #allocation10 [shape = 'u8[65536]{0}', space=vmem, size = 0x10000, scoped, tag = 'input window, operand 7, single buffered']
    #allocation11 [shape = 'u8[65536]{0}', space=vmem, size = 0x10000, scoped, tag = 'input window, operand 9, single buffered']
    #allocation12 [shape = 's32[1]{0}', space=sflag, size = 0x4, scoped, tag = 'scoped memory for tpu_custom_call.1']
    #allocation13 [shape = 'u8[32768]{0}', space=vmem, size = 0x8000, scoped, tag = 'input window, operand 11, single buffered']
    #allocation14 [shape = 'u8[8192]{0}', space=vmem, size = 0x2000, scoped, tag = 'output window, operand 0, single buffered']
    %18 = vsyncpa [#allocation3], 0
    %19 = vsyncpa [#allocation6], 0
    %20 = vsyncpa [#allocation9], 0
    %21 = vsyncpa [#allocation12], 0
    %22 = vsyncpa [#allocation4], 0
    // Predicated region
    $region2: #{tpu_custom_call.1} parent=1 // pred_check
      _
    $region3: #{tpu_custom_call.1} parent=1 // pred_check_branch
      %24 = sbr.rel (0) target = $region5
    $region4: #{tpu_custom_call.1} parent=1 // pred_region
      %s26 = ssub.s32 256, 256
      %27 = vsyncadd [#allocation3], %s26
      %s28 = sshll.u32 [#allocation2], 4
      %s29 = int_to_ptr.vmem [resolvable:$true] %s28
      %34 = dma.hbm_to_vmem [thread:$0]  %s0, 256, %s29, [#allocation3], 128, 128, 8
    $region5: #{tpu_custom_call.1} parent=1 // pred_fallthru
      _
    // Predicated region
    $region6: #{tpu_custom_call.1} parent=1 // pred_check
      _
    $region7: #{tpu_custom_call.1} parent=1 // pred_check_branch
      %36 = sbr.rel (0) target = $region9
    $region8: #{tpu_custom_call.1} parent=1 // pred_region
      %s38 = ssub.s32 1024, 1024
      %39 = vsyncadd [#allocation6], %s38
      %s40 = sshll.u32 [#allocation5], 4
      %s41 = int_to_ptr.vmem [resolvable:$true] %s40
      %46 = dma.hbm_to_vmem [thread:$0]  %s1, 1024, %s41, [#allocation6], 64, 64, 4
    $region9: #{tpu_custom_call.1} parent=1 // pred_fallthru
      _
    // Predicated region
    $region10: #{tpu_custom_call.1} parent=1 // pred_check
      _
    $region11: #{tpu_custom_call.1} parent=1 // pred_check_branch
      %48 = sbr.rel (0) target = $region13
    $region12: #{tpu_custom_call.1} parent=1 // pred_region
      _
    $region13: #{tpu_custom_call.1} parent=1 // pred_fallthru
      _
    // Predicated region
    $region14: #{tpu_custom_call.1} parent=1 // pred_check
      _
    $region15: #{tpu_custom_call.1} parent=1 // pred_check_branch
      %50 = sbr.rel (0) target = $region17
    $region16: #{tpu_custom_call.1} parent=1 // pred_region
      %s52 = ssub.s32 2048, 2048
      %53 = vsyncadd [#allocation6], %s52
      %s54 = sshll.u32 [#allocation7], 4
      %s55 = int_to_ptr.vmem [resolvable:$true] %s54
      %60 = dma.hbm_to_vmem [thread:$0]  %s3, 2048, %s55, [#allocation6], 64, 64, 4
    $region17: #{tpu_custom_call.1} parent=1 // pred_fallthru
      _
    // Predicated region
    $region18: #{tpu_custom_call.1} parent=1 // pred_check
      _
    $region19: #{tpu_custom_call.1} parent=1 // pred_check_branch
      %62 = sbr.rel (0) target = $region21
    $region20: #{tpu_custom_call.1} parent=1 // pred_region
      _
    $region21: #{tpu_custom_call.1} parent=1 // pred_fallthru
      _
    // Predicated region
    $region22: #{tpu_custom_call.1} parent=1 // pred_check
      _
    $region23: #{tpu_custom_call.1} parent=1 // pred_check_branch
      %64 = sbr.rel (0) target = $region25
    $region24: #{tpu_custom_call.1} parent=1 // pred_region
      %s66 = ssub.s32 2048, 2048
      %67 = vsyncadd [#allocation9], %s66
      %s68 = sshll.u32 [#allocation8], 4
      %s69 = int_to_ptr.vmem [resolvable:$true] %s68
      %74 = dma.hbm_to_vmem [thread:$0]  %s5, 2048, %s69, [#allocation9], 64, 64, 4
    $region25: #{tpu_custom_call.1} parent=1 // pred_fallthru
      _
    // Predicated region
    $region26: #{tpu_custom_call.1} parent=1 // pred_check
      _
    $region27: #{tpu_custom_call.1} parent=1 // pred_check_branch
      %76 = sbr.rel (0) target = $region29
    $region28: #{tpu_custom_call.1} parent=1 // pred_region
      _
    $region29: #{tpu_custom_call.1} parent=1 // pred_fallthru
      _
    // Predicated region
    $region30: #{tpu_custom_call.1} parent=1 // pred_check
      _
    $region31: #{tpu_custom_call.1} parent=1 // pred_check_branch
      %78 = sbr.rel (0) target = $region33
    $region32: #{tpu_custom_call.1} parent=1 // pred_region
      %s80 = ssub.s32 2048, 2048
      %81 = vsyncadd [#allocation9], %s80
      %s82 = sshll.u32 [#allocation10], 4
      %s83 = int_to_ptr.vmem [resolvable:$true] %s82
      %88 = dma.hbm_to_vmem [thread:$0]  %s7, 2048, %s83, [#allocation9], 64, 64, 4
    $region33: #{tpu_custom_call.1} parent=1 // pred_fallthru
      _
    // Predicated region
    $region34: #{tpu_custom_call.1} parent=1 // pred_check
      _
    $region35: #{tpu_custom_call.1} parent=1 // pred_check_branch
      %90 = sbr.rel (0) target = $region37
    $region36: #{tpu_custom_call.1} parent=1 // pred_region
      _
    $region37: #{tpu_custom_call.1} parent=1 // pred_fallthru
      _
    // Predicated region
    $region38: #{tpu_custom_call.1} parent=1 // pred_check
      _
    $region39: #{tpu_custom_call.1} parent=1 // pred_check_branch
      %92 = sbr.rel (0) target = $region41
    $region40: #{tpu_custom_call.1} parent=1 // pred_region
      %s94 = ssub.s32 2048, 2048
      %95 = vsyncadd [#allocation12], %s94
      %s96 = sshll.u32 [#allocation11], 4
      %s97 = int_to_ptr.vmem [resolvable:$true] %s96
      %102 = dma.hbm_to_vmem [thread:$0]  %s9, 2048, %s97, [#allocation12], 64, 64, 4
    $region41: #{tpu_custom_call.1} parent=1 // pred_fallthru
      _
    // Predicated region
    $region42: #{tpu_custom_call.1} parent=1 // pred_check
      _
    $region43: #{tpu_custom_call.1} parent=1 // pred_check_branch
      %104 = sbr.rel (0) target = $region45
    $region44: #{tpu_custom_call.1} parent=1 // pred_region
      _
    $region45: #{tpu_custom_call.1} parent=1 // pred_fallthru
      _
    // Predicated region
    $region46: #{tpu_custom_call.1} parent=1 // pred_check
      _
    $region47: #{tpu_custom_call.1} parent=1 // pred_check_branch
      %106 = sbr.rel (0) target = $region49
    $region48: #{tpu_custom_call.1} parent=1 // pred_region
      %s108 = ssub.s32 1024, 1024
      %109 = vsyncadd [#allocation12], %s108
      %s110 = sshll.u32 [#allocation13], 4
      %s111 = int_to_ptr.vmem [resolvable:$true] %s110
      %116 = dma.hbm_to_vmem [thread:$0]  %s11, 1024, %s111, [#allocation12], 64, 64, 4
    $region49: #{tpu_custom_call.1} parent=1 // pred_fallthru
      _
    // Predicated region
    $region50: #{tpu_custom_call.1} parent=1 // pred_check
      _
    $region51: #{tpu_custom_call.1} parent=1 // pred_check_branch
      %118 = sbr.rel (0) target = $region53
    $region52: #{tpu_custom_call.1} parent=1 // pred_region
      _
    $region53: #{tpu_custom_call.1} parent=1 // pred_fallthru
      _
    // Predicated region
    $region54: #{tpu_custom_call.1} parent=1 // pred_check
      _
    $region55: #{tpu_custom_call.1} parent=1 // pred_check_branch
      %120 = sbr.rel (0) target = $region57
    $region56: #{tpu_custom_call.1} parent=1 // pred_region
      %121 = dma.done [#allocation3], 256
    $region57: #{tpu_custom_call.1} parent=1 // pred_fallthru
      _
    // Predicated region
    $region58: #{tpu_custom_call.1} parent=1 // pred_check
      _
    $region59: #{tpu_custom_call.1} parent=1 // pred_check_branch
      %123 = sbr.rel (0) target = $region61
    $region60: #{tpu_custom_call.1} parent=1 // pred_region
      %124 = dma.done [#allocation6], 1024
    $region61: #{tpu_custom_call.1} parent=1 // pred_fallthru
      _
    // Predicated region
    $region62: #{tpu_custom_call.1} parent=1 // pred_check
      _
    $region63: #{tpu_custom_call.1} parent=1 // pred_check_branch
      %126 = sbr.rel (0) target = $region65
    $region64: #{tpu_custom_call.1} parent=1 // pred_region
      %127 = dma.done [#allocation6], 2048
    $region65: #{tpu_custom_call.1} parent=1 // pred_fallthru
      _
    // Predicated region
    $region66: #{tpu_custom_call.1} parent=1 // pred_check
      _
    $region67: #{tpu_custom_call.1} parent=1 // pred_check_branch
      %129 = sbr.rel (0) target = $region69
    $region68: #{tpu_custom_call.1} parent=1 // pred_region
      %130 = dma.done [#allocation9], 2048
    $region69: #{tpu_custom_call.1} parent=1 // pred_fallthru
      _
    // Predicated region
    $region70: #{tpu_custom_call.1} parent=1 // pred_check
      _
    $region71: #{tpu_custom_call.1} parent=1 // pred_check_branch
      %132 = sbr.rel (0) target = $region73
    $region72: #{tpu_custom_call.1} parent=1 // pred_region
      %133 = dma.done [#allocation9], 2048
    $region73: #{tpu_custom_call.1} parent=1 // pred_fallthru
      _
    // Predicated region
    $region74: #{tpu_custom_call.1} parent=1 // pred_check
      _
    $region75: #{tpu_custom_call.1} parent=1 // pred_check_branch
      %135 = sbr.rel (0) target = $region77
    $region76: #{tpu_custom_call.1} parent=1 // pred_region
      %136 = dma.done [#allocation12], 2048
    $region77: #{tpu_custom_call.1} parent=1 // pred_fallthru
      _
    // Predicated region
    $region78: #{tpu_custom_call.1} parent=1 // pred_check
      _
    $region79: #{tpu_custom_call.1} parent=1 // pred_check_branch
      %138 = sbr.rel (0) target = $region81
    $region80: #{tpu_custom_call.1} parent=1 // pred_region
      %139 = dma.done [#allocation12], 1024
    $region81: #{tpu_custom_call.1} parent=1 // pred_fallthru
      _
    %v141 = vlaneseq
    %v142 = vshrl.u32 %v141, 7
    %v143 = vadd.s32 %v142, 8
    %vm144 = vcmp.lt.s32.totalorder %v142, 0
    %v145 = vsub.s32 0, %v142
    %v146 = vsel %vm144, %v145, %v142
    %v147 = vshrl.u32 %v146, 3
    %v148 = vand.u32 %v146, 7
    %v149 = vsub.s32 0, %v148
    %v150 = vsel %vm144, %v149, %v148
    %vm151 = vcmp.lt.s32.totalorder %v143, 0
    %v152 = vsub.s32 0, %v143
    %v153 = vsel %vm151, %v152, %v143
    %v154 = vshrl.u32 %v153, 3
    %v155 = vand.u32 %v153, 7
    %v156 = vsub.s32 0, %v155
    %v157 = vsel %vm151, %v156, %v155
    %vm158 = vcmp.ne.s32.totalorder %v150, 0
    %vm159 = vcmp.ne.s32.totalorder %v157, 0
    %vm160 = vcmp.lt.s32.totalorder %v150, 0
    %vm161 = vcmp.lt.s32.totalorder %v157, 0
    %vm162 = vmand %vm160, %vm158
    %vm163 = vmand %vm161, %vm159
    %v164 = vadd.s32 %v150, 8
    %v165 = vadd.s32 %v157, 8
    %v166 = vsel %vm162, %v164, %v150
    %v167 = vsel %vm163, %v165, %v157
    %v168 = vld [vmem:[#allocation2] sm:$0xff]
    %v169 = vld [vmem:[#allocation2 + $0x8] sm:$0xff]
    %v170 = vpack.c.bf16 %v169, %v168
    %v171 = vld [vmem:[#allocation5] sm:$0xf]
    %v172 = vld [vmem:[#allocation5 + $0x4] sm:$0xf]
    %v173 = vld [vmem:[#allocation5 + $0x8] sm:$0xf]
    %v174 = vld [vmem:[#allocation5 + $0xc] sm:$0xf]
    %v175 = vld [vmem:[#allocation5 + $0x10] sm:$0xf]
    %v176 = vld [vmem:[#allocation5 + $0x14] sm:$0xf]
    %v177 = vld [vmem:[#allocation5 + $0x18] sm:$0xf]
    %v178 = vld [vmem:[#allocation5 + $0x1c] sm:$0xf]
    %v179 = vld [vmem:[#allocation5 + $0x20] sm:$0xf]
    %v180 = vld [vmem:[#allocation5 + $0x24] sm:$0xf]
    %v181 = vld [vmem:[#allocation5 + $0x28] sm:$0xf]
    %v182 = vld [vmem:[#allocation5 + $0x2c] sm:$0xf]
    %v183 = vld [vmem:[#allocation5 + $0x30] sm:$0xf]
    %v184 = vld [vmem:[#allocation5 + $0x34] sm:$0xf]
    %v185 = vld [vmem:[#allocation5 + $0x38] sm:$0xf]
    %v186 = vld [vmem:[#allocation5 + $0x3c] sm:$0xf]
    %v187 = vld [vmem:[%s2] sm:$0x1]
    %v188 = vunpack.c.l.bf16 %v187
    %v189 = vlaneseq
    %v190 = vshrl.u32 %v189, 7
    %v191 = vsub.s32 0, %v190
    %v192 = vrot.slane %v188, %v191
    %v209 = vunpack.c.l.b16 %v171
    %v210 = vunpack.c.l.b16 %v172
    %v211 = vunpack.c.l.b16 %v173
    %v212 = vunpack.c.l.b16 %v174
    %v213 = vunpack.c.l.b16 %v175
    %v214 = vunpack.c.l.b16 %v176
    %v215 = vunpack.c.l.b16 %v177
    %v216 = vunpack.c.l.b16 %v178
    %v217 = vunpack.c.l.b16 %v179
    %v218 = vunpack.c.l.b16 %v180
    %v219 = vunpack.c.l.b16 %v181
    %v220 = vunpack.c.l.b16 %v182
    %v221 = vunpack.c.l.b16 %v183
    %v222 = vunpack.c.l.b16 %v184
    %v223 = vunpack.c.l.b16 %v185
    %v224 = vunpack.c.l.b16 %v186
    %v225 = vpack.c.b16 %v210, %v209
    %v226 = vpack.c.b16 %v212, %v211
    %v227 = vpack.c.b16 %v214, %v213
    %v228 = vpack.c.b16 %v216, %v215
    %v229 = vpack.c.b16 %v218, %v217
    %v230 = vpack.c.b16 %v220, %v219
    %v231 = vpack.c.b16 %v222, %v221
    %v232 = vpack.c.b16 %v224, %v223
    %241 = vmatprep.subr.bf16.mxu0 0
    %242 = vmatpush1.bf16.msra.mxu0 %v225
    %243 = vmatprep.subr.bf16.mxu0 0
    %244 = vmatpush1.bf16.msra.mxu0 %v226
    %245 = vmatprep.subr.bf16.mxu0 0
    %246 = vmatpush1.bf16.msra.mxu0 %v227
    %247 = vmatprep.subr.bf16.mxu0 0
    %248 = vmatpush1.bf16.msra.mxu0 %v228
    %249 = vmatprep.subr.bf16.mxu0 0
    %250 = vmatpush1.bf16.msra.mxu0 %v229
    %251 = vmatprep.subr.bf16.mxu0 0
    %252 = vmatpush1.bf16.msra.mxu0 %v230
    %253 = vmatprep.subr.bf16.mxu0 0
    %254 = vmatpush1.bf16.msra.mxu0 %v231
    %255 = vmatprep.subr.bf16.mxu0 0
    %256 = vmatpush1.bf16.msra.mxu0 %v232
    %257 = vmatprep.subr.bf16.mxu0 0
    %258 = vmatpush1.bf16.msra.mxu0 0
    %259 = vmatprep.subr.bf16.mxu0 0
    %260 = vmatpush1.bf16.msra.mxu0 0
    %261 = vmatprep.subr.bf16.mxu0 0
    %262 = vmatpush1.bf16.msra.mxu0 0
    %263 = vmatprep.subr.bf16.mxu0 0
    %264 = vmatpush1.bf16.msra.mxu0 0
    %265 = vmatprep.subr.bf16.mxu0 0
    %266 = vmatpush1.bf16.msra.mxu0 0
    %267 = vmatprep.subr.bf16.mxu0 0
    %268 = vmatpush1.bf16.msra.mxu0 0
    %269 = vmatprep.subr.bf16.mxu0 0
    %270 = vmatpush1.bf16.msra.mxu0 0
    %271 = vmatprep.subr.bf16.mxu0 0
    %272 = vmatpush1.bf16.msra.mxu0 0
    %273 = vmatprep.mubr.bf16.mxu0 0
    %274 = vmatmul.mubr.bf16.gmra.mrb[0].mxu0 %v170
    %v275 = vpop.f32.mrb[0].mxu0
    %v276 = vadd.f32 %v192, %v275
    %v277 = vpop.f32.mrb[0].mxu0
    %v278 = vpop.f32.mrb[0].mxu0
    %v279 = vadd.f32 %v192, %v278
    %v280 = vpop.f32.mrb[0].mxu0
    %281 = vdwg.mxu0
    %v282 = vmax.f32 %v276, 0.0
    %v283 = vmax.f32 %v279, 0.0
    %v284 = vpack.c.bf16 %v283, %v282
    %v285 = vld [vmem:[#allocation7] sm:$0xf]
    %v286 = vld [vmem:[#allocation7 + $0x4] sm:$0xf]
    %v287 = vld [vmem:[#allocation7 + $0x8] sm:$0xf]
    %v288 = vld [vmem:[#allocation7 + $0xc] sm:$0xf]
    %v289 = vld [vmem:[#allocation7 + $0x10] sm:$0xf]
    %v290 = vld [vmem:[#allocation7 + $0x14] sm:$0xf]
    %v291 = vld [vmem:[#allocation7 + $0x18] sm:$0xf]
    %v292 = vld [vmem:[#allocation7 + $0x1c] sm:$0xf]
    %v293 = vld [vmem:[#allocation7 + $0x20] sm:$0xf]
    %v294 = vld [vmem:[#allocation7 + $0x24] sm:$0xf]
    %v295 = vld [vmem:[#allocation7 + $0x28] sm:$0xf]
    %v296 = vld [vmem:[#allocation7 + $0x2c] sm:$0xf]
    %v297 = vld [vmem:[#allocation7 + $0x30] sm:$0xf]
    %v298 = vld [vmem:[#allocation7 + $0x34] sm:$0xf]
    %v299 = vld [vmem:[#allocation7 + $0x38] sm:$0xf]
    %v300 = vld [vmem:[#allocation7 + $0x3c] sm:$0xf]
    %v317 = vunpack.c.l.b16 %v285
    %v318 = vunpack.c.l.b16 %v286
    %v319 = vunpack.c.l.b16 %v287
    %v320 = vunpack.c.l.b16 %v288
    %v321 = vunpack.c.l.b16 %v289
    %v322 = vunpack.c.l.b16 %v290
    %v323 = vunpack.c.l.b16 %v291
    %v324 = vunpack.c.l.b16 %v292
    %v325 = vunpack.c.l.b16 %v293
    %v326 = vunpack.c.l.b16 %v294
    %v327 = vunpack.c.l.b16 %v295
    %v328 = vunpack.c.l.b16 %v296
    %v329 = vunpack.c.l.b16 %v297
    %v330 = vunpack.c.l.b16 %v298
    %v331 = vunpack.c.l.b16 %v299
    %v332 = vunpack.c.l.b16 %v300
    %v333 = vpack.c.b16 %v318, %v317
    %v334 = vpack.c.b16 %v320, %v319
    %v335 = vpack.c.b16 %v322, %v321
    %v336 = vpack.c.b16 %v324, %v323
    %v337 = vpack.c.b16 %v326, %v325
    %v338 = vpack.c.b16 %v328, %v327
    %v339 = vpack.c.b16 %v330, %v329
    %v340 = vpack.c.b16 %v332, %v331
    %349 = vmatprep.subr.bf16.mxu0 0
    %350 = vmatpush1.bf16.msra.mxu0 %v333
    %351 = vmatprep.subr.bf16.mxu0 0
    %352 = vmatpush1.bf16.msra.mxu0 %v334
    %353 = vmatprep.subr.bf16.mxu0 0
    %354 = vmatpush1.bf16.msra.mxu0 %v335
    %355 = vmatprep.subr.bf16.mxu0 0
    %356 = vmatpush1.bf16.msra.mxu0 %v336
    %357 = vmatprep.subr.bf16.mxu0 0
    %358 = vmatpush1.bf16.msra.mxu0 %v337
    %359 = vmatprep.subr.bf16.mxu0 0
    %360 = vmatpush1.bf16.msra.mxu0 %v338
    %361 = vmatprep.subr.bf16.mxu0 0
    %362 = vmatpush1.bf16.msra.mxu0 %v339
    %363 = vmatprep.subr.bf16.mxu0 0
    %364 = vmatpush1.bf16.msra.mxu0 %v340
    %365 = vmatprep.subr.bf16.mxu0 0
    %366 = vmatpush1.bf16.msra.mxu0 0
    %367 = vmatprep.subr.bf16.mxu0 0
    %368 = vmatpush1.bf16.msra.mxu0 0
    %369 = vmatprep.subr.bf16.mxu0 0
    %370 = vmatpush1.bf16.msra.mxu0 0
    %371 = vmatprep.subr.bf16.mxu0 0
    %372 = vmatpush1.bf16.msra.mxu0 0
    %373 = vmatprep.subr.bf16.mxu0 0
    %374 = vmatpush1.bf16.msra.mxu0 0
    %375 = vmatprep.subr.bf16.mxu0 0
    %376 = vmatpush1.bf16.msra.mxu0 0
    %377 = vmatprep.subr.bf16.mxu0 0
    %378 = vmatpush1.bf16.msra.mxu0 0
    %379 = vmatprep.subr.bf16.mxu0 0
    %380 = vmatpush1.bf16.msra.mxu0 0
    %381 = vmatprep.mubr.bf16.mxu0 0
    %382 = vmatmul.mubr.bf16.gmra.mrb[0].mxu0 %v284
    %v383 = vpop.f32.mrb[0].mxu0
    %v384 = vadd.f32 0.0, %v383
    %v385 = vpop.f32.mrb[0].mxu0
    %v386 = vpop.f32.mrb[0].mxu0
    %v387 = vadd.f32 0.0, %v386
    %v388 = vpop.f32.mrb[0].mxu0
    %389 = vdwg.mxu0
    %s390 = scalar_lea.vmem [#allocation7], 64
    %v391 = vld [vmem:[%s390] sm:$0xf]
    %v392 = vld [vmem:[%s390 + $0x4] sm:$0xf]
    %v393 = vld [vmem:[%s390 + $0x8] sm:$0xf]
    %v394 = vld [vmem:[%s390 + $0xc] sm:$0xf]
    %v395 = vld [vmem:[%s390 + $0x10] sm:$0xf]
    %v396 = vld [vmem:[%s390 + $0x14] sm:$0xf]
    %v397 = vld [vmem:[%s390 + $0x18] sm:$0xf]
    %v398 = vld [vmem:[%s390 + $0x1c] sm:$0xf]
    %v399 = vld [vmem:[%s390 + $0x20] sm:$0xf]
    %v400 = vld [vmem:[%s390 + $0x24] sm:$0xf]
    %v401 = vld [vmem:[%s390 + $0x28] sm:$0xf]
    %v402 = vld [vmem:[%s390 + $0x2c] sm:$0xf]
    %v403 = vld [vmem:[%s390 + $0x30] sm:$0xf]
    %v404 = vld [vmem:[%s390 + $0x34] sm:$0xf]
    %v405 = vld [vmem:[%s390 + $0x38] sm:$0xf]
    %v406 = vld [vmem:[%s390 + $0x3c] sm:$0xf]
    %v423 = vunpack.c.l.b16 %v391
    %v424 = vunpack.c.l.b16 %v392
    %v425 = vunpack.c.l.b16 %v393
    %v426 = vunpack.c.l.b16 %v394
    %v427 = vunpack.c.l.b16 %v395
    %v428 = vunpack.c.l.b16 %v396
    %v429 = vunpack.c.l.b16 %v397
    %v430 = vunpack.c.l.b16 %v398
    %v431 = vunpack.c.l.b16 %v399
    %v432 = vunpack.c.l.b16 %v400
    %v433 = vunpack.c.l.b16 %v401
    %v434 = vunpack.c.l.b16 %v402
    %v435 = vunpack.c.l.b16 %v403
    %v436 = vunpack.c.l.b16 %v404
    %v437 = vunpack.c.l.b16 %v405
    %v438 = vunpack.c.l.b16 %v406
    %v439 = vpack.c.b16 %v424, %v423
    %v440 = vpack.c.b16 %v426, %v425
    %v441 = vpack.c.b16 %v428, %v427
    %v442 = vpack.c.b16 %v430, %v429
    %v443 = vpack.c.b16 %v432, %v431
    %v444 = vpack.c.b16 %v434, %v433
    %v445 = vpack.c.b16 %v436, %v435
    %v446 = vpack.c.b16 %v438, %v437
    %455 = vmatprep.subr.bf16.mxu0 0
    %456 = vmatpush1.bf16.msra.mxu0 %v439
    %457 = vmatprep.subr.bf16.mxu0 0
    %458 = vmatpush1.bf16.msra.mxu0 %v440
    %459 = vmatprep.subr.bf16.mxu0 0
    %460 = vmatpush1.bf16.msra.mxu0 %v441
    %461 = vmatprep.subr.bf16.mxu0 0
    %462 = vmatpush1.bf16.msra.mxu0 %v442
    %463 = vmatprep.subr.bf16.mxu0 0
    %464 = vmatpush1.bf16.msra.mxu0 %v443
    %465 = vmatprep.subr.bf16.mxu0 0
    %466 = vmatpush1.bf16.msra.mxu0 %v444
    %467 = vmatprep.subr.bf16.mxu0 0
    %468 = vmatpush1.bf16.msra.mxu0 %v445
    %469 = vmatprep.subr.bf16.mxu0 0
    %470 = vmatpush1.bf16.msra.mxu0 %v446
    %471 = vmatprep.subr.bf16.mxu0 0
    %472 = vmatpush1.bf16.msra.mxu0 0
    %473 = vmatprep.subr.bf16.mxu0 0
    %474 = vmatpush1.bf16.msra.mxu0 0
    %475 = vmatprep.subr.bf16.mxu0 0
    %476 = vmatpush1.bf16.msra.mxu0 0
    %477 = vmatprep.subr.bf16.mxu0 0
    %478 = vmatpush1.bf16.msra.mxu0 0
    %479 = vmatprep.subr.bf16.mxu0 0
    %480 = vmatpush1.bf16.msra.mxu0 0
    %481 = vmatprep.subr.bf16.mxu0 0
    %482 = vmatpush1.bf16.msra.mxu0 0
    %483 = vmatprep.subr.bf16.mxu0 0
    %484 = vmatpush1.bf16.msra.mxu0 0
    %485 = vmatprep.subr.bf16.mxu0 0
    %486 = vmatpush1.bf16.msra.mxu0 0
    %487 = vmatprep.mubr.bf16.mxu0 0
    %488 = vmatmul.mubr.bf16.gmra.mrb[0].mxu0 %v284
    %v489 = vpop.f32.mrb[0].mxu0
    %v490 = vadd.f32 0.0, %v489
    %v491 = vpop.f32.mrb[0].mxu0
    %v492 = vpop.f32.mrb[0].mxu0
    %v493 = vadd.f32 0.0, %v492
    %v494 = vpop.f32.mrb[0].mxu0
    %495 = vdwg.mxu0
    %v496 = vrot.slane %v384, 7
    %v497 = vrot.slane %v387, 7
    %vm498 = vcmp.lt.s32.totalorder %v142, 1
    %v499 = vsel %vm498, %v496, %v497
    %v500 = vsel %vm498, %v497, %v496
    %vm501 = vcmp.ge.s32.totalorder %v166, 1
    %vm502 = vcmp.ge.s32.totalorder %v167, 1
    %v503 = vsel %vm501, %v500, 0.0
    %v504 = vsel %vm502, %v499, 0.0
    %v505 = vadd.f32 %v503, %v490
    %v506 = vadd.f32 %v504, %v493
    %v507 = vld [vmem:[%s4] sm:$0x1]
    %v508 = vunpack.c.l.bf16 %v507
    %v509 = vlaneseq
    %v510 = vshrl.u32 %v509, 7
    %v511 = vsub.s32 0, %v510
    %v512 = vrot.slane %v508, %v511
    %v513 = vadd.f32 %v505, %v512
    %v514 = vadd.f32 %v506, %v512
    %v515 = vmax.f32 %v513, 0.0
    %v516 = vmax.f32 %v514, 0.0
    %v517 = vpack.c.bf16 %v516, %v515
    %v518 = vld [vmem:[#allocation8] sm:$0xf]
    %v519 = vld [vmem:[#allocation8 + $0x4] sm:$0xf]
    %v520 = vld [vmem:[#allocation8 + $0x8] sm:$0xf]
    %v521 = vld [vmem:[#allocation8 + $0xc] sm:$0xf]
    %v522 = vld [vmem:[#allocation8 + $0x10] sm:$0xf]
    %v523 = vld [vmem:[#allocation8 + $0x14] sm:$0xf]
    %v524 = vld [vmem:[#allocation8 + $0x18] sm:$0xf]
    %v525 = vld [vmem:[#allocation8 + $0x1c] sm:$0xf]
    %v526 = vld [vmem:[#allocation8 + $0x20] sm:$0xf]
    %v527 = vld [vmem:[#allocation8 + $0x24] sm:$0xf]
    %v528 = vld [vmem:[#allocation8 + $0x28] sm:$0xf]
    %v529 = vld [vmem:[#allocation8 + $0x2c] sm:$0xf]
    %v530 = vld [vmem:[#allocation8 + $0x30] sm:$0xf]
    %v531 = vld [vmem:[#allocation8 + $0x34] sm:$0xf]
    %v532 = vld [vmem:[#allocation8 + $0x38] sm:$0xf]
    %v533 = vld [vmem:[#allocation8 + $0x3c] sm:$0xf]
    %v550 = vunpack.c.l.b16 %v518
    %v551 = vunpack.c.l.b16 %v519
    %v552 = vunpack.c.l.b16 %v520
    %v553 = vunpack.c.l.b16 %v521
    %v554 = vunpack.c.l.b16 %v522
    %v555 = vunpack.c.l.b16 %v523
    %v556 = vunpack.c.l.b16 %v524
    %v557 = vunpack.c.l.b16 %v525
    %v558 = vunpack.c.l.b16 %v526
    %v559 = vunpack.c.l.b16 %v527
    %v560 = vunpack.c.l.b16 %v528
    %v561 = vunpack.c.l.b16 %v529
    %v562 = vunpack.c.l.b16 %v530
    %v563 = vunpack.c.l.b16 %v531
    %v564 = vunpack.c.l.b16 %v532
    %v565 = vunpack.c.l.b16 %v533
    %v566 = vpack.c.b16 %v551, %v550
    %v567 = vpack.c.b16 %v553, %v552
    %v568 = vpack.c.b16 %v555, %v554
    %v569 = vpack.c.b16 %v557, %v556
    %v570 = vpack.c.b16 %v559, %v558
    %v571 = vpack.c.b16 %v561, %v560
    %v572 = vpack.c.b16 %v563, %v562
    %v573 = vpack.c.b16 %v565, %v564
    %582 = vmatprep.subr.bf16.mxu0 0
    %583 = vmatpush1.bf16.msra.mxu0 %v566
    %584 = vmatprep.subr.bf16.mxu0 0
    %585 = vmatpush1.bf16.msra.mxu0 %v567
    %586 = vmatprep.subr.bf16.mxu0 0
    %587 = vmatpush1.bf16.msra.mxu0 %v568
    %588 = vmatprep.subr.bf16.mxu0 0
    %589 = vmatpush1.bf16.msra.mxu0 %v569
    %590 = vmatprep.subr.bf16.mxu0 0
    %591 = vmatpush1.bf16.msra.mxu0 %v570
    %592 = vmatprep.subr.bf16.mxu0 0
    %593 = vmatpush1.bf16.msra.mxu0 %v571
    %594 = vmatprep.subr.bf16.mxu0 0
    %595 = vmatpush1.bf16.msra.mxu0 %v572
    %596 = vmatprep.subr.bf16.mxu0 0
    %597 = vmatpush1.bf16.msra.mxu0 %v573
    %598 = vmatprep.subr.bf16.mxu0 0
    %599 = vmatpush1.bf16.msra.mxu0 0
    %600 = vmatprep.subr.bf16.mxu0 0
    %601 = vmatpush1.bf16.msra.mxu0 0
    %602 = vmatprep.subr.bf16.mxu0 0
    %603 = vmatpush1.bf16.msra.mxu0 0
    %604 = vmatprep.subr.bf16.mxu0 0
    %605 = vmatpush1.bf16.msra.mxu0 0
    %606 = vmatprep.subr.bf16.mxu0 0
    %607 = vmatpush1.bf16.msra.mxu0 0
    %608 = vmatprep.subr.bf16.mxu0 0
    %609 = vmatpush1.bf16.msra.mxu0 0
    %610 = vmatprep.subr.bf16.mxu0 0
    %611 = vmatpush1.bf16.msra.mxu0 0
    %612 = vmatprep.subr.bf16.mxu0 0
    %613 = vmatpush1.bf16.msra.mxu0 0
    %614 = vmatprep.mubr.bf16.mxu0 0
    %615 = vmatmul.mubr.bf16.gmra.mrb[0].mxu0 %v517
    %v616 = vpop.f32.mrb[0].mxu0
    %v617 = vadd.f32 0.0, %v616
    %v618 = vpop.f32.mrb[0].mxu0
    %v619 = vpop.f32.mrb[0].mxu0
    %v620 = vadd.f32 0.0, %v619
    %v621 = vpop.f32.mrb[0].mxu0
    %622 = vdwg.mxu0
    %s623 = scalar_lea.vmem [#allocation8], 64
    %v624 = vld [vmem:[%s623] sm:$0xf]
    %v625 = vld [vmem:[%s623 + $0x4] sm:$0xf]
    %v626 = vld [vmem:[%s623 + $0x8] sm:$0xf]
    %v627 = vld [vmem:[%s623 + $0xc] sm:$0xf]
    %v628 = vld [vmem:[%s623 + $0x10] sm:$0xf]
    %v629 = vld [vmem:[%s623 + $0x14] sm:$0xf]
    %v630 = vld [vmem:[%s623 + $0x18] sm:$0xf]
    %v631 = vld [vmem:[%s623 + $0x1c] sm:$0xf]
    %v632 = vld [vmem:[%s623 + $0x20] sm:$0xf]
    %v633 = vld [vmem:[%s623 + $0x24] sm:$0xf]
    %v634 = vld [vmem:[%s623 + $0x28] sm:$0xf]
    %v635 = vld [vmem:[%s623 + $0x2c] sm:$0xf]
    %v636 = vld [vmem:[%s623 + $0x30] sm:$0xf]
    %v637 = vld [vmem:[%s623 + $0x34] sm:$0xf]
    %v638 = vld [vmem:[%s623 + $0x38] sm:$0xf]
    %v639 = vld [vmem:[%s623 + $0x3c] sm:$0xf]
    %v656 = vunpack.c.l.b16 %v624
    %v657 = vunpack.c.l.b16 %v625
    %v658 = vunpack.c.l.b16 %v626
    %v659 = vunpack.c.l.b16 %v627
    %v660 = vunpack.c.l.b16 %v628
    %v661 = vunpack.c.l.b16 %v629
    %v662 = vunpack.c.l.b16 %v630
    %v663 = vunpack.c.l.b16 %v631
    %v664 = vunpack.c.l.b16 %v632
    %v665 = vunpack.c.l.b16 %v633
    %v666 = vunpack.c.l.b16 %v634
    %v667 = vunpack.c.l.b16 %v635
    %v668 = vunpack.c.l.b16 %v636
    %v669 = vunpack.c.l.b16 %v637
    %v670 = vunpack.c.l.b16 %v638
    %v671 = vunpack.c.l.b16 %v639
    %v672 = vpack.c.b16 %v657, %v656
    %v673 = vpack.c.b16 %v659, %v658
    %v674 = vpack.c.b16 %v661, %v660
    %v675 = vpack.c.b16 %v663, %v662
    %v676 = vpack.c.b16 %v665, %v664
    %v677 = vpack.c.b16 %v667, %v666
    %v678 = vpack.c.b16 %v669, %v668
    %v679 = vpack.c.b16 %v671, %v670
    %688 = vmatprep.subr.bf16.mxu0 0
    %689 = vmatpush1.bf16.msra.mxu0 %v672
    %690 = vmatprep.subr.bf16.mxu0 0
    %691 = vmatpush1.bf16.msra.mxu0 %v673
    %692 = vmatprep.subr.bf16.mxu0 0
    %693 = vmatpush1.bf16.msra.mxu0 %v674
    %694 = vmatprep.subr.bf16.mxu0 0
    %695 = vmatpush1.bf16.msra.mxu0 %v675
    %696 = vmatprep.subr.bf16.mxu0 0
    %697 = vmatpush1.bf16.msra.mxu0 %v676
    %698 = vmatprep.subr.bf16.mxu0 0
    %699 = vmatpush1.bf16.msra.mxu0 %v677
    %700 = vmatprep.subr.bf16.mxu0 0
    %701 = vmatpush1.bf16.msra.mxu0 %v678
    %702 = vmatprep.subr.bf16.mxu0 0
    %703 = vmatpush1.bf16.msra.mxu0 %v679
    %704 = vmatprep.subr.bf16.mxu0 0
    %705 = vmatpush1.bf16.msra.mxu0 0
    %706 = vmatprep.subr.bf16.mxu0 0
    %707 = vmatpush1.bf16.msra.mxu0 0
    %708 = vmatprep.subr.bf16.mxu0 0
    %709 = vmatpush1.bf16.msra.mxu0 0
    %710 = vmatprep.subr.bf16.mxu0 0
    %711 = vmatpush1.bf16.msra.mxu0 0
    %712 = vmatprep.subr.bf16.mxu0 0
    %713 = vmatpush1.bf16.msra.mxu0 0
    %714 = vmatprep.subr.bf16.mxu0 0
    %715 = vmatpush1.bf16.msra.mxu0 0
    %716 = vmatprep.subr.bf16.mxu0 0
    %717 = vmatpush1.bf16.msra.mxu0 0
    %718 = vmatprep.subr.bf16.mxu0 0
    %719 = vmatpush1.bf16.msra.mxu0 0
    %720 = vmatprep.mubr.bf16.mxu0 0
    %721 = vmatmul.mubr.bf16.gmra.mrb[0].mxu0 %v517
    %v722 = vpop.f32.mrb[0].mxu0
    %v723 = vadd.f32 0.0, %v722
    %v724 = vpop.f32.mrb[0].mxu0
    %v725 = vpop.f32.mrb[0].mxu0
    %v726 = vadd.f32 0.0, %v725
    %v727 = vpop.f32.mrb[0].mxu0
    %728 = vdwg.mxu0
    %v729 = vrot.slane %v617, 7
    %v730 = vrot.slane %v620, 7
    %v731 = vsel %vm498, %v729, %v730
    %v732 = vsel %vm498, %v730, %v729
    %v733 = vsel %vm501, %v732, 0.0
    %v734 = vsel %vm502, %v731, 0.0
    %v735 = vadd.f32 %v733, %v723
    %v736 = vadd.f32 %v734, %v726
    %v737 = vld [vmem:[%s6] sm:$0x1]
    %v738 = vunpack.c.l.bf16 %v737
    %v739 = vlaneseq
    %v740 = vshrl.u32 %v739, 7
    %v741 = vsub.s32 0, %v740
    %v742 = vrot.slane %v738, %v741
    %v743 = vadd.f32 %v735, %v742
    %v744 = vadd.f32 %v736, %v742
    %v745 = vmax.f32 %v743, 0.0
    %v746 = vmax.f32 %v744, 0.0
    %v747 = vadd.f32 %v745, %v282
    %v748 = vadd.f32 %v746, %v283
    %v749 = vmax.f32 %v747, 0.0
    %v750 = vmax.f32 %v748, 0.0
    %v751 = vpack.c.bf16 %v750, %v749
    %v752 = vld [vmem:[#allocation10] sm:$0xf]
    %v753 = vld [vmem:[#allocation10 + $0x4] sm:$0xf]
    %v754 = vld [vmem:[#allocation10 + $0x8] sm:$0xf]
    %v755 = vld [vmem:[#allocation10 + $0xc] sm:$0xf]
    %v756 = vld [vmem:[#allocation10 + $0x10] sm:$0xf]
    %v757 = vld [vmem:[#allocation10 + $0x14] sm:$0xf]
    %v758 = vld [vmem:[#allocation10 + $0x18] sm:$0xf]
    %v759 = vld [vmem:[#allocation10 + $0x1c] sm:$0xf]
    %v760 = vld [vmem:[#allocation10 + $0x20] sm:$0xf]
    %v761 = vld [vmem:[#allocation10 + $0x24] sm:$0xf]
    %v762 = vld [vmem:[#allocation10 + $0x28] sm:$0xf]
    %v763 = vld [vmem:[#allocation10 + $0x2c] sm:$0xf]
    %v764 = vld [vmem:[#allocation10 + $0x30] sm:$0xf]
    %v765 = vld [vmem:[#allocation10 + $0x34] sm:$0xf]
    %v766 = vld [vmem:[#allocation10 + $0x38] sm:$0xf]
    %v767 = vld [vmem:[#allocation10 + $0x3c] sm:$0xf]
    %v784 = vunpack.c.l.b16 %v752
    %v785 = vunpack.c.l.b16 %v753
    %v786 = vunpack.c.l.b16 %v754
    %v787 = vunpack.c.l.b16 %v755
    %v788 = vunpack.c.l.b16 %v756
    %v789 = vunpack.c.l.b16 %v757
    %v790 = vunpack.c.l.b16 %v758
    %v791 = vunpack.c.l.b16 %v759
    %v792 = vunpack.c.l.b16 %v760
    %v793 = vunpack.c.l.b16 %v761
    %v794 = vunpack.c.l.b16 %v762
    %v795 = vunpack.c.l.b16 %v763
    %v796 = vunpack.c.l.b16 %v764
    %v797 = vunpack.c.l.b16 %v765
    %v798 = vunpack.c.l.b16 %v766
    %v799 = vunpack.c.l.b16 %v767
    %v800 = vpack.c.b16 %v785, %v784
    %v801 = vpack.c.b16 %v787, %v786
    %v802 = vpack.c.b16 %v789, %v788
    %v803 = vpack.c.b16 %v791, %v790
    %v804 = vpack.c.b16 %v793, %v792
    %v805 = vpack.c.b16 %v795, %v794
    %v806 = vpack.c.b16 %v797, %v796
    %v807 = vpack.c.b16 %v799, %v798
    %816 = vmatprep.subr.bf16.mxu0 0
    %817 = vmatpush1.bf16.msra.mxu0 %v800
    %818 = vmatprep.subr.bf16.mxu0 0
    %819 = vmatpush1.bf16.msra.mxu0 %v801
    %820 = vmatprep.subr.bf16.mxu0 0
    %821 = vmatpush1.bf16.msra.mxu0 %v802
    %822 = vmatprep.subr.bf16.mxu0 0
    %823 = vmatpush1.bf16.msra.mxu0 %v803
    %824 = vmatprep.subr.bf16.mxu0 0
    %825 = vmatpush1.bf16.msra.mxu0 %v804
    %826 = vmatprep.subr.bf16.mxu0 0
    %827 = vmatpush1.bf16.msra.mxu0 %v805
    %828 = vmatprep.subr.bf16.mxu0 0
    %829 = vmatpush1.bf16.msra.mxu0 %v806
    %830 = vmatprep.subr.bf16.mxu0 0
    %831 = vmatpush1.bf16.msra.mxu0 %v807
    %832 = vmatprep.subr.bf16.mxu0 0
    %833 = vmatpush1.bf16.msra.mxu0 0
    %834 = vmatprep.subr.bf16.mxu0 0
    %835 = vmatpush1.bf16.msra.mxu0 0
    %836 = vmatprep.subr.bf16.mxu0 0
    %837 = vmatpush1.bf16.msra.mxu0 0
    %838 = vmatprep.subr.bf16.mxu0 0
    %839 = vmatpush1.bf16.msra.mxu0 0
    %840 = vmatprep.subr.bf16.mxu0 0
    %841 = vmatpush1.bf16.msra.mxu0 0
    %842 = vmatprep.subr.bf16.mxu0 0
    %843 = vmatpush1.bf16.msra.mxu0 0
    %844 = vmatprep.subr.bf16.mxu0 0
    %845 = vmatpush1.bf16.msra.mxu0 0
    %846 = vmatprep.subr.bf16.mxu0 0
    %847 = vmatpush1.bf16.msra.mxu0 0
    %848 = vmatprep.mubr.bf16.mxu0 0
    %849 = vmatmul.mubr.bf16.gmra.mrb[0].mxu0 %v751
    %v850 = vpop.f32.mrb[0].mxu0
    %v851 = vadd.f32 0.0, %v850
    %v852 = vpop.f32.mrb[0].mxu0
    %v853 = vpop.f32.mrb[0].mxu0
    %v854 = vadd.f32 0.0, %v853
    %v855 = vpop.f32.mrb[0].mxu0
    %856 = vdwg.mxu0
    %s857 = scalar_lea.vmem [#allocation10], 64
    %v858 = vld [vmem:[%s857] sm:$0xf]
    %v859 = vld [vmem:[%s857 + $0x4] sm:$0xf]
    %v860 = vld [vmem:[%s857 + $0x8] sm:$0xf]
    %v861 = vld [vmem:[%s857 + $0xc] sm:$0xf]
    %v862 = vld [vmem:[%s857 + $0x10] sm:$0xf]
    %v863 = vld [vmem:[%s857 + $0x14] sm:$0xf]
    %v864 = vld [vmem:[%s857 + $0x18] sm:$0xf]
    %v865 = vld [vmem:[%s857 + $0x1c] sm:$0xf]
    %v866 = vld [vmem:[%s857 + $0x20] sm:$0xf]
    %v867 = vld [vmem:[%s857 + $0x24] sm:$0xf]
    %v868 = vld [vmem:[%s857 + $0x28] sm:$0xf]
    %v869 = vld [vmem:[%s857 + $0x2c] sm:$0xf]
    %v870 = vld [vmem:[%s857 + $0x30] sm:$0xf]
    %v871 = vld [vmem:[%s857 + $0x34] sm:$0xf]
    %v872 = vld [vmem:[%s857 + $0x38] sm:$0xf]
    %v873 = vld [vmem:[%s857 + $0x3c] sm:$0xf]
    %v890 = vunpack.c.l.b16 %v858
    %v891 = vunpack.c.l.b16 %v859
    %v892 = vunpack.c.l.b16 %v860
    %v893 = vunpack.c.l.b16 %v861
    %v894 = vunpack.c.l.b16 %v862
    %v895 = vunpack.c.l.b16 %v863
    %v896 = vunpack.c.l.b16 %v864
    %v897 = vunpack.c.l.b16 %v865
    %v898 = vunpack.c.l.b16 %v866
    %v899 = vunpack.c.l.b16 %v867
    %v900 = vunpack.c.l.b16 %v868
    %v901 = vunpack.c.l.b16 %v869
    %v902 = vunpack.c.l.b16 %v870
    %v903 = vunpack.c.l.b16 %v871
    %v904 = vunpack.c.l.b16 %v872
    %v905 = vunpack.c.l.b16 %v873
    %v906 = vpack.c.b16 %v891, %v890
    %v907 = vpack.c.b16 %v893, %v892
    %v908 = vpack.c.b16 %v895, %v894
    %v909 = vpack.c.b16 %v897, %v896
    %v910 = vpack.c.b16 %v899, %v898
    %v911 = vpack.c.b16 %v901, %v900
    %v912 = vpack.c.b16 %v903, %v902
    %v913 = vpack.c.b16 %v905, %v904
    %922 = vmatprep.subr.bf16.mxu0 0
    %923 = vmatpush1.bf16.msra.mxu0 %v906
    %924 = vmatprep.subr.bf16.mxu0 0
    %925 = vmatpush1.bf16.msra.mxu0 %v907
    %926 = vmatprep.subr.bf16.mxu0 0
    %927 = vmatpush1.bf16.msra.mxu0 %v908
    %928 = vmatprep.subr.bf16.mxu0 0
    %929 = vmatpush1.bf16.msra.mxu0 %v909
    %930 = vmatprep.subr.bf16.mxu0 0
    %931 = vmatpush1.bf16.msra.mxu0 %v910
    %932 = vmatprep.subr.bf16.mxu0 0
    %933 = vmatpush1.bf16.msra.mxu0 %v911
    %934 = vmatprep.subr.bf16.mxu0 0
    %935 = vmatpush1.bf16.msra.mxu0 %v912
    %936 = vmatprep.subr.bf16.mxu0 0
    %937 = vmatpush1.bf16.msra.mxu0 %v913
    %938 = vmatprep.subr.bf16.mxu0 0
    %939 = vmatpush1.bf16.msra.mxu0 0
    %940 = vmatprep.subr.bf16.mxu0 0
    %941 = vmatpush1.bf16.msra.mxu0 0
    %942 = vmatprep.subr.bf16.mxu0 0
    %943 = vmatpush1.bf16.msra.mxu0 0
    %944 = vmatprep.subr.bf16.mxu0 0
    %945 = vmatpush1.bf16.msra.mxu0 0
    %946 = vmatprep.subr.bf16.mxu0 0
    %947 = vmatpush1.bf16.msra.mxu0 0
    %948 = vmatprep.subr.bf16.mxu0 0
    %949 = vmatpush1.bf16.msra.mxu0 0
    %950 = vmatprep.subr.bf16.mxu0 0
    %951 = vmatpush1.bf16.msra.mxu0 0
    %952 = vmatprep.subr.bf16.mxu0 0
    %953 = vmatpush1.bf16.msra.mxu0 0
    %954 = vmatprep.mubr.bf16.mxu0 0
    %955 = vmatmul.mubr.bf16.gmra.mrb[0].mxu0 %v751
    %v956 = vpop.f32.mrb[0].mxu0
    %v957 = vadd.f32 0.0, %v956
    %v958 = vpop.f32.mrb[0].mxu0
    %v959 = vpop.f32.mrb[0].mxu0
    %v960 = vadd.f32 0.0, %v959
    %v961 = vpop.f32.mrb[0].mxu0
    %962 = vdwg.mxu0
    %v963 = vrot.slane %v851, 6
    %v964 = vrot.slane %v854, 6
    %vm965 = vcmp.lt.s32.totalorder %v142, 2
    %v966 = vsel %vm965, %v963, %v964
    %v967 = vsel %vm965, %v964, %v963
    %vm968 = vcmp.ge.s32.totalorder %v166, 2
    %vm969 = vcmp.ge.s32.totalorder %v167, 2
    %v970 = vsel %vm968, %v967, 0.0
    %v971 = vsel %vm969, %v966, 0.0
    %v972 = vadd.f32 %v970, %v957
    %v973 = vadd.f32 %v971, %v960
    %v974 = vld [vmem:[%s8] sm:$0x1]
    %v975 = vunpack.c.l.bf16 %v974
    %v976 = vlaneseq
    %v977 = vshrl.u32 %v976, 7
    %v978 = vsub.s32 0, %v977
    %v979 = vrot.slane %v975, %v978
    %v980 = vadd.f32 %v972, %v979
    %v981 = vadd.f32 %v973, %v979
    %v982 = vmax.f32 %v980, 0.0
    %v983 = vmax.f32 %v981, 0.0
    %v984 = vld [vmem:[#allocation13] sm:$0xf]
    %v985 = vld [vmem:[#allocation13 + $0x4] sm:$0xf]
    %v986 = vld [vmem:[#allocation13 + $0x8] sm:$0xf]
    %v987 = vld [vmem:[#allocation13 + $0xc] sm:$0xf]
    %v988 = vld [vmem:[#allocation13 + $0x10] sm:$0xf]
    %v989 = vld [vmem:[#allocation13 + $0x14] sm:$0xf]
    %v990 = vld [vmem:[#allocation13 + $0x18] sm:$0xf]
    %v991 = vld [vmem:[#allocation13 + $0x1c] sm:$0xf]
    %v992 = vld [vmem:[#allocation13 + $0x20] sm:$0xf]
    %v993 = vld [vmem:[#allocation13 + $0x24] sm:$0xf]
    %v994 = vld [vmem:[#allocation13 + $0x28] sm:$0xf]
    %v995 = vld [vmem:[#allocation13 + $0x2c] sm:$0xf]
    %v996 = vld [vmem:[#allocation13 + $0x30] sm:$0xf]
    %v997 = vld [vmem:[#allocation13 + $0x34] sm:$0xf]
    %v998 = vld [vmem:[#allocation13 + $0x38] sm:$0xf]
    %v999 = vld [vmem:[#allocation13 + $0x3c] sm:$0xf]
    %v1000 = vld [vmem:[%s12] sm:$0x1]
    %v1001 = vunpack.c.l.bf16 %v1000
    %v1002 = vlaneseq
    %v1003 = vshrl.u32 %v1002, 7
    %v1004 = vsub.s32 0, %v1003
    %v1005 = vrot.slane %v1001, %v1004
    %v1022 = vunpack.c.l.b16 %v984
    %v1023 = vunpack.c.l.b16 %v985
    %v1024 = vunpack.c.l.b16 %v986
    %v1025 = vunpack.c.l.b16 %v987
    %v1026 = vunpack.c.l.b16 %v988
    %v1027 = vunpack.c.l.b16 %v989
    %v1028 = vunpack.c.l.b16 %v990
    %v1029 = vunpack.c.l.b16 %v991
    %v1030 = vunpack.c.l.b16 %v992
    %v1031 = vunpack.c.l.b16 %v993
    %v1032 = vunpack.c.l.b16 %v994
    %v1033 = vunpack.c.l.b16 %v995
    %v1034 = vunpack.c.l.b16 %v996
    %v1035 = vunpack.c.l.b16 %v997
    %v1036 = vunpack.c.l.b16 %v998
    %v1037 = vunpack.c.l.b16 %v999
    %v1038 = vpack.c.b16 %v1023, %v1022
    %v1039 = vpack.c.b16 %v1025, %v1024
    %v1040 = vpack.c.b16 %v1027, %v1026
    %v1041 = vpack.c.b16 %v1029, %v1028
    %v1042 = vpack.c.b16 %v1031, %v1030
    %v1043 = vpack.c.b16 %v1033, %v1032
    %v1044 = vpack.c.b16 %v1035, %v1034
    %v1045 = vpack.c.b16 %v1037, %v1036
    %1054 = vmatprep.subr.bf16.mxu0 0
    %1055 = vmatpush1.bf16.msra.mxu0 %v1038
    %1056 = vmatprep.subr.bf16.mxu0 0
    %1057 = vmatpush1.bf16.msra.mxu0 %v1039
    %1058 = vmatprep.subr.bf16.mxu0 0
    %1059 = vmatpush1.bf16.msra.mxu0 %v1040
    %1060 = vmatprep.subr.bf16.mxu0 0
    %1061 = vmatpush1.bf16.msra.mxu0 %v1041
    %1062 = vmatprep.subr.bf16.mxu0 0
    %1063 = vmatpush1.bf16.msra.mxu0 %v1042
    %1064 = vmatprep.subr.bf16.mxu0 0
    %1065 = vmatpush1.bf16.msra.mxu0 %v1043
    %1066 = vmatprep.subr.bf16.mxu0 0
    %1067 = vmatpush1.bf16.msra.mxu0 %v1044
    %1068 = vmatprep.subr.bf16.mxu0 0
    %1069 = vmatpush1.bf16.msra.mxu0 %v1045
    %1070 = vmatprep.subr.bf16.mxu0 0
    %1071 = vmatpush1.bf16.msra.mxu0 0
    %1072 = vmatprep.subr.bf16.mxu0 0
    %1073 = vmatpush1.bf16.msra.mxu0 0
    %1074 = vmatprep.subr.bf16.mxu0 0
    %1075 = vmatpush1.bf16.msra.mxu0 0
    %1076 = vmatprep.subr.bf16.mxu0 0
    %1077 = vmatpush1.bf16.msra.mxu0 0
    %1078 = vmatprep.subr.bf16.mxu0 0
    %1079 = vmatpush1.bf16.msra.mxu0 0
    %1080 = vmatprep.subr.bf16.mxu0 0
    %1081 = vmatpush1.bf16.msra.mxu0 0
    %1082 = vmatprep.subr.bf16.mxu0 0
    %1083 = vmatpush1.bf16.msra.mxu0 0
    %1084 = vmatprep.subr.bf16.mxu0 0
    %1085 = vmatpush1.bf16.msra.mxu0 0
    %1086 = vmatprep.mubr.bf16.mxu0 0
    %1087 = vmatmul.mubr.bf16.gmra.mrb[0].mxu0 %v751
    %v1088 = vpop.f32.mrb[0].mxu0
    %v1089 = vadd.f32 %v1005, %v1088
    %v1090 = vpop.f32.mrb[0].mxu0
    %v1091 = vpop.f32.mrb[0].mxu0
    %v1092 = vadd.f32 %v1005, %v1091
    %v1093 = vpop.f32.mrb[0].mxu0
    %1094 = vdwg.mxu0
    %v1095 = vpack.c.bf16 %v983, %v982
    %v1096 = vld [vmem:[#allocation11] sm:$0xf]
    %v1097 = vld [vmem:[#allocation11 + $0x4] sm:$0xf]
    %v1098 = vld [vmem:[#allocation11 + $0x8] sm:$0xf]
    %v1099 = vld [vmem:[#allocation11 + $0xc] sm:$0xf]
    %v1100 = vld [vmem:[#allocation11 + $0x10] sm:$0xf]
    %v1101 = vld [vmem:[#allocation11 + $0x14] sm:$0xf]
    %v1102 = vld [vmem:[#allocation11 + $0x18] sm:$0xf]
    %v1103 = vld [vmem:[#allocation11 + $0x1c] sm:$0xf]
    %v1104 = vld [vmem:[#allocation11 + $0x20] sm:$0xf]
    %v1105 = vld [vmem:[#allocation11 + $0x24] sm:$0xf]
    %v1106 = vld [vmem:[#allocation11 + $0x28] sm:$0xf]
    %v1107 = vld [vmem:[#allocation11 + $0x2c] sm:$0xf]
    %v1108 = vld [vmem:[#allocation11 + $0x30] sm:$0xf]
    %v1109 = vld [vmem:[#allocation11 + $0x34] sm:$0xf]
    %v1110 = vld [vmem:[#allocation11 + $0x38] sm:$0xf]
    %v1111 = vld [vmem:[#allocation11 + $0x3c] sm:$0xf]
    %v1128 = vunpack.c.l.b16 %v1096
    %v1129 = vunpack.c.l.b16 %v1097
    %v1130 = vunpack.c.l.b16 %v1098
    %v1131 = vunpack.c.l.b16 %v1099
    %v1132 = vunpack.c.l.b16 %v1100
    %v1133 = vunpack.c.l.b16 %v1101
    %v1134 = vunpack.c.l.b16 %v1102
    %v1135 = vunpack.c.l.b16 %v1103
    %v1136 = vunpack.c.l.b16 %v1104
    %v1137 = vunpack.c.l.b16 %v1105
    %v1138 = vunpack.c.l.b16 %v1106
    %v1139 = vunpack.c.l.b16 %v1107
    %v1140 = vunpack.c.l.b16 %v1108
    %v1141 = vunpack.c.l.b16 %v1109
    %v1142 = vunpack.c.l.b16 %v1110
    %v1143 = vunpack.c.l.b16 %v1111
    %v1144 = vpack.c.b16 %v1129, %v1128
    %v1145 = vpack.c.b16 %v1131, %v1130
    %v1146 = vpack.c.b16 %v1133, %v1132
    %v1147 = vpack.c.b16 %v1135, %v1134
    %v1148 = vpack.c.b16 %v1137, %v1136
    %v1149 = vpack.c.b16 %v1139, %v1138
    %v1150 = vpack.c.b16 %v1141, %v1140
    %v1151 = vpack.c.b16 %v1143, %v1142
    %1160 = vmatprep.subr.bf16.mxu0 0
    %1161 = vmatpush1.bf16.msra.mxu0 %v1144
    %1162 = vmatprep.subr.bf16.mxu0 0
    %1163 = vmatpush1.bf16.msra.mxu0 %v1145
    %1164 = vmatprep.subr.bf16.mxu0 0
    %1165 = vmatpush1.bf16.msra.mxu0 %v1146
    %1166 = vmatprep.subr.bf16.mxu0 0
    %1167 = vmatpush1.bf16.msra.mxu0 %v1147
    %1168 = vmatprep.subr.bf16.mxu0 0
    %1169 = vmatpush1.bf16.msra.mxu0 %v1148
    %1170 = vmatprep.subr.bf16.mxu0 0
    %1171 = vmatpush1.bf16.msra.mxu0 %v1149
    %1172 = vmatprep.subr.bf16.mxu0 0
    %1173 = vmatpush1.bf16.msra.mxu0 %v1150
    %1174 = vmatprep.subr.bf16.mxu0 0
    %1175 = vmatpush1.bf16.msra.mxu0 %v1151
    %1176 = vmatprep.subr.bf16.mxu0 0
    %1177 = vmatpush1.bf16.msra.mxu0 0
    %1178 = vmatprep.subr.bf16.mxu0 0
    %1179 = vmatpush1.bf16.msra.mxu0 0
    %1180 = vmatprep.subr.bf16.mxu0 0
    %1181 = vmatpush1.bf16.msra.mxu0 0
    %1182 = vmatprep.subr.bf16.mxu0 0
    %1183 = vmatpush1.bf16.msra.mxu0 0
    %1184 = vmatprep.subr.bf16.mxu0 0
    %1185 = vmatpush1.bf16.msra.mxu0 0
    %1186 = vmatprep.subr.bf16.mxu0 0
    %1187 = vmatpush1.bf16.msra.mxu0 0
    %1188 = vmatprep.subr.bf16.mxu0 0
    %1189 = vmatpush1.bf16.msra.mxu0 0
    %1190 = vmatprep.subr.bf16.mxu0 0
    %1191 = vmatpush1.bf16.msra.mxu0 0
    %1192 = vmatprep.mubr.bf16.mxu0 0
    %1193 = vmatmul.mubr.bf16.gmra.mrb[0].mxu0 %v1095
    %v1194 = vpop.f32.mrb[0].mxu0
    %v1195 = vadd.f32 0.0, %v1194
    %v1196 = vpop.f32.mrb[0].mxu0
    %v1197 = vpop.f32.mrb[0].mxu0
    %v1198 = vadd.f32 0.0, %v1197
    %v1199 = vpop.f32.mrb[0].mxu0
    %1200 = vdwg.mxu0
    %s1201 = scalar_lea.vmem [#allocation11], 64
    %v1202 = vld [vmem:[%s1201] sm:$0xf]
    %v1203 = vld [vmem:[%s1201 + $0x4] sm:$0xf]
    %v1204 = vld [vmem:[%s1201 + $0x8] sm:$0xf]
    %v1205 = vld [vmem:[%s1201 + $0xc] sm:$0xf]
    %v1206 = vld [vmem:[%s1201 + $0x10] sm:$0xf]
    %v1207 = vld [vmem:[%s1201 + $0x14] sm:$0xf]
    %v1208 = vld [vmem:[%s1201 + $0x18] sm:$0xf]
    %v1209 = vld [vmem:[%s1201 + $0x1c] sm:$0xf]
    %v1210 = vld [vmem:[%s1201 + $0x20] sm:$0xf]
    %v1211 = vld [vmem:[%s1201 + $0x24] sm:$0xf]
    %v1212 = vld [vmem:[%s1201 + $0x28] sm:$0xf]
    %v1213 = vld [vmem:[%s1201 + $0x2c] sm:$0xf]
    %v1214 = vld [vmem:[%s1201 + $0x30] sm:$0xf]
    %v1215 = vld [vmem:[%s1201 + $0x34] sm:$0xf]
    %v1216 = vld [vmem:[%s1201 + $0x38] sm:$0xf]
    %v1217 = vld [vmem:[%s1201 + $0x3c] sm:$0xf]
    %v1234 = vunpack.c.l.b16 %v1202
    %v1235 = vunpack.c.l.b16 %v1203
    %v1236 = vunpack.c.l.b16 %v1204
    %v1237 = vunpack.c.l.b16 %v1205
    %v1238 = vunpack.c.l.b16 %v1206
    %v1239 = vunpack.c.l.b16 %v1207
    %v1240 = vunpack.c.l.b16 %v1208
    %v1241 = vunpack.c.l.b16 %v1209
    %v1242 = vunpack.c.l.b16 %v1210
    %v1243 = vunpack.c.l.b16 %v1211
    %v1244 = vunpack.c.l.b16 %v1212
    %v1245 = vunpack.c.l.b16 %v1213
    %v1246 = vunpack.c.l.b16 %v1214
    %v1247 = vunpack.c.l.b16 %v1215
    %v1248 = vunpack.c.l.b16 %v1216
    %v1249 = vunpack.c.l.b16 %v1217
    %v1250 = vpack.c.b16 %v1235, %v1234
    %v1251 = vpack.c.b16 %v1237, %v1236
    %v1252 = vpack.c.b16 %v1239, %v1238
    %v1253 = vpack.c.b16 %v1241, %v1240
    %v1254 = vpack.c.b16 %v1243, %v1242
    %v1255 = vpack.c.b16 %v1245, %v1244
    %v1256 = vpack.c.b16 %v1247, %v1246
    %v1257 = vpack.c.b16 %v1249, %v1248
    %1266 = vmatprep.subr.bf16.mxu0 0
    %1267 = vmatpush1.bf16.msra.mxu0 %v1250
    %1268 = vmatprep.subr.bf16.mxu0 0
    %1269 = vmatpush1.bf16.msra.mxu0 %v1251
    %1270 = vmatprep.subr.bf16.mxu0 0
    %1271 = vmatpush1.bf16.msra.mxu0 %v1252
    %1272 = vmatprep.subr.bf16.mxu0 0
    %1273 = vmatpush1.bf16.msra.mxu0 %v1253
    %1274 = vmatprep.subr.bf16.mxu0 0
    %1275 = vmatpush1.bf16.msra.mxu0 %v1254
    %1276 = vmatprep.subr.bf16.mxu0 0
    %1277 = vmatpush1.bf16.msra.mxu0 %v1255
    %1278 = vmatprep.subr.bf16.mxu0 0
    %1279 = vmatpush1.bf16.msra.mxu0 %v1256
    %1280 = vmatprep.subr.bf16.mxu0 0
    %1281 = vmatpush1.bf16.msra.mxu0 %v1257
    %1282 = vmatprep.subr.bf16.mxu0 0
    %1283 = vmatpush1.bf16.msra.mxu0 0
    %1284 = vmatprep.subr.bf16.mxu0 0
    %1285 = vmatpush1.bf16.msra.mxu0 0
    %1286 = vmatprep.subr.bf16.mxu0 0
    %1287 = vmatpush1.bf16.msra.mxu0 0
    %1288 = vmatprep.subr.bf16.mxu0 0
    %1289 = vmatpush1.bf16.msra.mxu0 0
    %1290 = vmatprep.subr.bf16.mxu0 0
    %1291 = vmatpush1.bf16.msra.mxu0 0
    %1292 = vmatprep.subr.bf16.mxu0 0
    %1293 = vmatpush1.bf16.msra.mxu0 0
    %1294 = vmatprep.subr.bf16.mxu0 0
    %1295 = vmatpush1.bf16.msra.mxu0 0
    %1296 = vmatprep.subr.bf16.mxu0 0
    %1297 = vmatpush1.bf16.msra.mxu0 0
    %1298 = vmatprep.mubr.bf16.mxu0 0
    %1299 = vmatmul.mubr.bf16.gmra.mrb[0].mxu0 %v1095
    %v1300 = vpop.f32.mrb[0].mxu0
    %v1301 = vadd.f32 0.0, %v1300
    %v1302 = vpop.f32.mrb[0].mxu0
    %v1303 = vpop.f32.mrb[0].mxu0
    %v1304 = vadd.f32 0.0, %v1303
    %v1305 = vpop.f32.mrb[0].mxu0
    %1306 = vdwg.mxu0
    %v1307 = vrot.slane %v1195, 6
    %v1308 = vrot.slane %v1198, 6
    %v1309 = vsel %vm965, %v1307, %v1308
    %v1310 = vsel %vm965, %v1308, %v1307
    %v1311 = vsel %vm968, %v1310, 0.0
    %v1312 = vsel %vm969, %v1309, 0.0
    %v1313 = vadd.f32 %v1311, %v1301
    %v1314 = vadd.f32 %v1312, %v1304
    %v1315 = vld [vmem:[%s10] sm:$0x1]
    %v1316 = vunpack.c.l.bf16 %v1315
    %v1317 = vlaneseq
    %v1318 = vshrl.u32 %v1317, 7
    %v1319 = vsub.s32 0, %v1318
    %v1320 = vrot.slane %v1316, %v1319
    %v1321 = vadd.f32 %v1313, %v1320
    %v1322 = vadd.f32 %v1314, %v1320
    %v1323 = vmax.f32 %v1321, 0.0
    %v1324 = vmax.f32 %v1322, 0.0
    %v1325 = vadd.f32 %v1323, %v1089
    %v1326 = vadd.f32 %v1324, %v1092
    %v1327 = vmax.f32 %v1325, 0.0
    %v1328 = vmax.f32 %v1326, 0.0
    %1329 = vst [vmem:[#allocation14] sm:$0xff] %v1327
    %1330 = vst [vmem:[#allocation14 + $0x8] sm:$0xff] %v1328
    // Predicated region
    $region82: #{tpu_custom_call.1} parent=1 // pred_check
      _
    $region83: #{tpu_custom_call.1} parent=1 // pred_check_branch
      %1332 = sbr.rel (0) target = $region85
    $region84: #{tpu_custom_call.1} parent=1 // pred_region
      %s1334 = ssub.s32 256, 256
      %1335 = vsyncadd [#allocation4], %s1334
      %s1336 = sshll.u32 [#allocation14], 4
      %s1337 = int_to_ptr.vmem [resolvable:$true] %s1336
      %1342 = dma.vmem_to_hbm [thread:$0]  %s1337, 256, %s13, [#allocation4], 128, 128, 8
    $region85: #{tpu_custom_call.1} parent=1 // pred_fallthru
      _
    // Predicated region
    $region86: #{tpu_custom_call.1} parent=1 // pred_check
      _
    $region87: #{tpu_custom_call.1} parent=1 // pred_check_branch
      %1344 = sbr.rel (0) target = $region89
    $region88: #{tpu_custom_call.1} parent=1 // pred_region
      %1345 = dma.done [#allocation4], 256
    $region89: #{tpu_custom_call.1} parent=1 // pred_fallthru
      _
    %1346 = vsyncpa [#allocation3], 1
    %1347 = vsyncpa [#allocation6], 1
    %1348 = vsyncpa [#allocation9], 1
    %1349 = vsyncpa [#allocation12], 1
    %1350 = vsyncpa [#allocation4], 1

</llo_original>
